<compile_context>
chip_gen: v7x
topology: tpu7x:2x2x1
jax: 0.10.0
libtpu: 0.0.40
codegen_flags: <defaults>
</compile_context>

<pallas_src>
import jax
import jax.numpy as jnp
from jax.experimental import pallas as pl
from jax.experimental.pallas import tpu as pltpu

EPS = 1e-3  # BatchNorm2d eps=0.001


def conv1x1_bn_kernel(w_ref, x_ref, gamma_ref, beta_ref, o_ref):
    # w_ref:     (TCO, Cin)  bf16 1x1 conv weight block (pre-cast at setup)
    # x_ref:     (Cin, M)    f32 flattened activations (M = N*H*W), full block
    # gamma_ref: (TCO, 1)    f32
    # beta_ref:  (TCO, 1)    f32
    # o_ref:     (TCO, M)    f32
    # Cast to bf16 inside the kernel (VPU pass) -- avoids standalone XLA
    # convert ops and an extra HBM round trip in the wrapper.
    xb = x_ref[...].astype(jnp.bfloat16)
    wb = w_ref[...].astype(jnp.bfloat16)  # no-op when already bf16
    y = jnp.dot(wb, xb, preferred_element_type=jnp.float32)  # (TCO, M) f32

    # BatchNorm2d training-mode batch stats: biased mean/var over (N, H, W),
    # i.e. over the M lanes, per output channel (row).  One-pass variance,
    # clamped at 0 to guard against f32 cancellation (E[y^2] - mean^2 < 0).
    m = y.shape[1]
    inv_m = 1.0 / m  # compile-time constant
    sum_y = jnp.sum(y, axis=-1, keepdims=True)           # (TCO, 1)
    sum_y2 = jnp.sum(y * y, axis=-1, keepdims=True)      # (TCO, 1)
    mean = sum_y * inv_m
    var = jnp.maximum(sum_y2 * inv_m - mean * mean, 0.0)
    inv_std = jax.lax.rsqrt(var + EPS)

    # Fold into a single per-channel scale/shift; one FMA over the big tile.
    scale = gamma_ref[...] * inv_std                      # (TCO, 1)
    shift = beta_ref[...] - mean * scale                  # (TCO, 1)
    o_ref[...] = (y * scale + shift).astype(o_ref.dtype)


def conv1x1_batchnorm(x_nchw, w_oi_bf16, gamma, beta):
    """x_nchw: (N, Cin, H, W) f32; w_oi_bf16: (Cout, Cin) bf16 1x1 conv weight
    (cast once at parameter setup); gamma/beta: (Cout,) f32."""
    n, cin, h, w = x_nchw.shape
    cout = w_oi_bf16.shape[0]
    m = n * h * w

    # (Cin, M) orientation: free reshape when N == 1 (the module's case).
    if n == 1:
        x_cm = x_nchw.reshape(cin, m)
    else:
        # TODO(synk): for N > 1 this materializes an NCHW->CNHW transpose; the
        # module only uses N == 1 so the transpose path is a rarely-hit fallback.
        x_cm = jnp.transpose(x_nchw, (1, 0, 2, 3)).reshape(cin, m)

    gamma2 = gamma.reshape(cout, 1).astype(jnp.float32)
    beta2 = beta.reshape(cout, 1).astype(jnp.float32)

    # 2-way split over Cout (per-channel BN stats -> blocks are independent).
    tco = cout // 2 if (cout % 16 == 0) else cout
    grid = (cout // tco,)

    cost = pl.CostEstimate(
        flops=2 * m * cin * cout,
        transcendentals=cout,  # rsqrt per channel
        bytes_accessed=(cin * m * 4 + cout * cin * 2 + cout * m * 4 + 2 * cout * 4),
    )

    out_cm = pl.pallas_call(
        conv1x1_bn_kernel,
        out_shape=jax.ShapeDtypeStruct((cout, m), jnp.float32),
        grid=grid,
        in_specs=[
            pl.BlockSpec((tco, cin), lambda i: (i, 0)),   # weight block per step
            pl.BlockSpec((cin, m), lambda i: (0, 0)),     # x constant across grid
            pl.BlockSpec((tco, 1), lambda i: (i, 0)),
            pl.BlockSpec((tco, 1), lambda i: (i, 0)),
        ],
        out_specs=pl.BlockSpec((tco, m), lambda i: (i, 0)),
        compiler_params=pltpu.CompilerParams(
            dimension_semantics=("parallel",),
        ),
        cost_estimate=cost,
    )(w_oi_bf16, x_cm, gamma2, beta2)

    # (Cout, M) -> NCHW. Free reshape when N == 1.
    if n == 1:
        return out_cm.reshape(1, cout, h, w)
    return jnp.transpose(out_cm.reshape(cout, n, h, w), (1, 0, 2, 3))


def _reference(x_nchw, w_oi, gamma, beta):
    """Pure-JAX f32 reference of Conv1x1 + training-mode BatchNorm2d."""
    n, cin, h, w = x_nchw.shape
    cout = w_oi.shape[0]
    xf = jnp.transpose(x_nchw, (0, 2, 3, 1)).reshape(n * h * w, cin)
    y = xf @ w_oi.T                                      # (M, Cout)
    mean = jnp.mean(y, axis=0, keepdims=True)
    var = jnp.mean((y - mean) ** 2, axis=0, keepdims=True)
    yn = (y - mean) * jax.lax.rsqrt(var + EPS) * gamma[None, :] + beta[None, :]
    return jnp.transpose(yn.reshape(n, h, w, cout), (0, 3, 1, 2))


if __name__ == "__main__":
    # Shapes implied by the module's forward: x249 is [1, 960, 14, 14].
    N, CIN, H, W = 1, 960, 14, 14
    COUT = 160

    key = jax.random.PRNGKey(0)
    kx, kw, kg, kb = jax.random.split(key, 4)

    x = jax.random.normal(kx, (N, CIN, H, W), dtype=jnp.float32)
    conv_w = jax.random.normal(kw, (COUT, CIN), dtype=jnp.float32) * (1.0 / jnp.sqrt(CIN))
    gamma = 1.0 + 0.1 * jax.random.normal(kg, (COUT,), dtype=jnp.float32)
    beta = 0.1 * jax.random.normal(kb, (COUT,), dtype=jnp.float32)

    # "Parameter setup": cast the constant conv weight to bf16 exactly once.
    conv_w_bf16 = conv_w.astype(jnp.bfloat16)

    out = conv1x1_batchnorm(x, conv_w_bf16, gamma, beta)
    jax.block_until_ready(out)

    assert out.shape == (N, COUT, H, W), out.shape

    ref = _reference(x, conv_w, gamma, beta)
    err = jnp.max(jnp.abs(out - ref))
    assert jnp.isfinite(err) and err < 5e-2, f"max abs err {err}"

    # TODO(synk): PyTorch BN in training mode also updates running_mean/var
    # (momentum=0.1); only the forward activation is produced here.
    print("KERNEL_OK")
</pallas_src>

<mosaic_0001>
module attributes {stable_mosaic.version = 11 : i64} {
  func.func @conv1x1_bn_kernel(%arg0: i32, %arg1: memref<80x960xbf16, #tpu.memory_space<vmem>>, %arg2: memref<960x196xf32, #tpu.memory_space<vmem>>, %arg3: memref<80x1xf32, #tpu.memory_space<vmem>>, %arg4: memref<80x1xf32, #tpu.memory_space<vmem>>, %arg5: memref<80x196xf32, #tpu.memory_space<vmem>>) attributes {dimension_semantics = [#tpu.dimension_semantics<parallel>], iteration_bounds = array<i64: 2>, scalar_prefetch = 0 : i64, scratch_operands = 0 : i64, tpu.core_type = #tpu.core_type<tc>, window_params = [{transform_indices = @transform_0, window_bounds = array<i64: 80, 960>}, {pipeline_mode = #tpu.pipeline_mode<synchronous>, transform_indices = @transform_1, window_bounds = array<i64: 960, 196>}, {transform_indices = @transform_2, window_bounds = array<i64: 80, 1>}, {transform_indices = @transform_3, window_bounds = array<i64: 80, 1>}, {transform_indices = @transform_4, window_bounds = array<i64: 80, 196>}]} {
    %c0 = arith.constant 0 : index
    %c0_0 = arith.constant 0 : index
    %0 = vector.load %arg2[%c0, %c0_0] : memref<960x196xf32, #tpu.memory_space<vmem>>, vector<960x196xf32>
    %1 = arith.truncf %0 : vector<960x196xf32> to vector<960x196xbf16>
    %c0_1 = arith.constant 0 : index
    %c0_2 = arith.constant 0 : index
    %2 = vector.load %arg1[%c0_1, %c0_2] : memref<80x960xbf16, #tpu.memory_space<vmem>>, vector<80x960xbf16>
    %cst = arith.constant dense<0.000000e+00> : vector<80x196xf32>
    %3 = tpu.matmul %2, %1, %cst {dimension_numbers = #tpu.dot_dimension_numbers<[1], [0], [0], [1], [0, 0, 1, 1], [], []>} : vector<80x960xbf16>, vector<960x196xbf16>, vector<80x196xf32> -> vector<80x196xf32>
    %cst_3 = arith.constant dense<0.000000e+00> : vector<80xf32>
    %4 = vector.multi_reduction <add>, %3, %cst_3 [1] : vector<80x196xf32> to vector<80xf32>
    %5 = vector.shape_cast %4 : vector<80xf32> to vector<80x1xf32>
    %6 = arith.mulf %3, %3 : vector<80x196xf32>
    %cst_4 = arith.constant dense<0.000000e+00> : vector<80xf32>
    %7 = vector.multi_reduction <add>, %6, %cst_4 [1] : vector<80x196xf32> to vector<80xf32>
    %8 = vector.shape_cast %7 : vector<80xf32> to vector<80x1xf32>
    %cst_5 = arith.constant 0.00510204071 : f32
    %9 = vector.broadcast %cst_5 : f32 to vector<80x1xf32>
    %10 = arith.mulf %5, %9 : vector<80x1xf32>
    %cst_6 = arith.constant 0.00510204071 : f32
    %11 = vector.broadcast %cst_6 : f32 to vector<80x1xf32>
    %12 = arith.mulf %8, %11 : vector<80x1xf32>
    %13 = arith.mulf %10, %10 : vector<80x1xf32>
    %14 = arith.subf %12, %13 : vector<80x1xf32>
    %cst_7 = arith.constant 0.000000e+00 : f32
    %15 = vector.broadcast %cst_7 : f32 to vector<80x1xf32>
    %16 = arith.maximumf %14, %15 : vector<80x1xf32>
    %cst_8 = arith.constant 1.000000e-03 : f32
    %17 = vector.broadcast %cst_8 : f32 to vector<80x1xf32>
    %18 = arith.addf %16, %17 : vector<80x1xf32>
    %19 = math.rsqrt %18 : vector<80x1xf32>
    %c0_9 = arith.constant 0 : index
    %c0_10 = arith.constant 0 : index
    %20 = vector.load %arg3[%c0_9, %c0_10] : memref<80x1xf32, #tpu.memory_space<vmem>>, vector<80x1xf32>
    %21 = arith.mulf %20, %19 : vector<80x1xf32>
    %c0_11 = arith.constant 0 : index
    %c0_12 = arith.constant 0 : index
    %22 = vector.load %arg4[%c0_11, %c0_12] : memref<80x1xf32, #tpu.memory_space<vmem>>, vector<80x1xf32>
    %23 = arith.mulf %10, %21 : vector<80x1xf32>
    %24 = arith.subf %22, %23 : vector<80x1xf32>
    %25 = vector.broadcast %21 : vector<80x1xf32> to vector<80x196xf32>
    %26 = arith.mulf %3, %25 : vector<80x196xf32>
    %27 = vector.broadcast %24 : vector<80x1xf32> to vector<80x196xf32>
    %28 = arith.addf %26, %27 : vector<80x196xf32>
    %c0_13 = arith.constant 0 : index
    %c0_14 = arith.constant 0 : index
    %29 = vector.load %arg5[%c0_13, %c0_14] : memref<80x196xf32, #tpu.memory_space<vmem>>, vector<80x196xf32>
    tpu.vector_store %arg5[%c0_13, %c0_14], %28 {strides = array<i32>} : memref<80x196xf32, #tpu.memory_space<vmem>>, vector<80x196xf32>,
    return
  }
  func.func @transform_0(%arg0: i32) -> (i32, i32) {
    %c0_i32 = arith.constant 0 : i32
    %c0_i32_0 = arith.constant 0 : i32
    return %arg0, %c0_i32 : i32, i32
  }
  func.func @transform_1(%arg0: i32) -> (i32, i32) {
    %c0_i32 = arith.constant 0 : i32
    %c0_i32_0 = arith.constant 0 : i32
    %c0_i32_1 = arith.constant 0 : i32
    return %c0_i32, %c0_i32_0 : i32, i32
  }
  func.func @transform_2(%arg0: i32) -> (i32, i32) {
    %c0_i32 = arith.constant 0 : i32
    %c0_i32_0 = arith.constant 0 : i32
    return %arg0, %c0_i32 : i32, i32
  }
  func.func @transform_3(%arg0: i32) -> (i32, i32) {
    %c0_i32 = arith.constant 0 : i32
    %c0_i32_0 = arith.constant 0 : i32
    return %arg0, %c0_i32 : i32, i32
  }
  func.func @transform_4(%arg0: i32) -> (i32, i32) {
    %c0_i32 = arith.constant 0 : i32
    %c0_i32_0 = arith.constant 0 : i32
    return %arg0, %c0_i32 : i32, i32
  }
}

</mosaic_0001>

<llo_original>
// kernel: tpu_custom_call.1
$region0: #{tpu_custom_call.1}
  #allocation0 [shape = 'u32[]', space=smem, size = 0x4, offset = 0x4, fixed_abs, tag = 'smem constant byte address 0x4 - core index']
  #allocation1 [shape = 'u32[144,128]{1,0:T(1,128)}', space=vmem, size = 0x12000, scoped, tag = 'internal scratch']
  %s0 = inlined_call_operand.vmem [shape: bf16[160,960], index: 0, kind: input, shape index: {}]
  %s1 = inlined_call_operand.vmem [shape: f32[960,196], index: 1, kind: input, shape index: {}]
  %s2 = inlined_call_operand.vmem [shape: f32[160,1], index: 2, kind: input, shape index: {}]
  %s3 = inlined_call_operand.vmem [shape: f32[160,1], index: 3, kind: input, shape index: {}]
  %s4 = inlined_call_operand.hbm [shape: f32[160,196], index: 4, kind: output, shape index: {}]
  %s5 = sld [smem:[#allocation0]]
  $region49: #{tpu_custom_call.1} parent=0
    _
  %s7 = ssub.s32 1, %s5
  %s8 = scalar_select 0, %s7, %s5
  $region1: #{tpu_custom_call.1} parent=0
    #allocation2 [shape = 'u8[163840]{0}', space=vmem, size = 0x28000, scoped, tag = 'output window, operand 0']
    #allocation3 [shape = 's32[2]{0}', space=sflag, size = 0x8, scoped, tag = 'scoped memory for tpu_custom_call.1']
    %9 = vsyncpa [#allocation3], 0
    %s10 = scalar_lea.sflag [#allocation3], 1
    %11 = vsyncpa %s10, 0
    loop: start=0, step=1, limit=4
    $region2: #{tpu_custom_call.1} parent=1 // loop_pre_header
      _
    $region3: #{tpu_custom_call.1} parent=1 // loop_header
      %s13 = sphi 0, %s17
      %p14 = scmp.ge.s32.totalorder %s13, 4
      %s23 = sphi 0, %s25
      %s26 = sphi 0, %s23
      %s27 = sphi 0, %s26
      %s43 = sphi 0, %s27
      %s47 = sphi 0, %s47
      %s49 = sphi 0, %s47
      %s50 = sphi 0, %s49
      %s64 = sphi 0, %s50
      %s70 = sphi 0, %s72
      %s73 = sphi 0, %s70
      %s74 = sphi 0, %s73
      %s90 = sphi 0, %s74
      %s96 = sphi 0, %s98
      %s99 = sphi 0, %s96
      %s100 = sphi 0, %s99
      %s116 = sphi 0, %s100
      %s122 = sphi 0, %s124
      %s125 = sphi 0, %s122
      %s126 = sphi 0, %s125
      %s142 = sphi 0, %s126
    $region4: #{tpu_custom_call.1} parent=1 // loop_header_branch
      %16 = sbr.rel (%p14) target = $region8
    $region5: #{tpu_custom_call.1} parent=1 // loop_body
      %s18 = ssub.s32 %s13, 1
      %s19 = ssub.s32 %s13, 2
      %s20 = sadd.s32 %s13, 1
      %s21 = ssub.s32 %s13, %s20
      %p22 = scmp.eq.s32.totalorder %s21, 0
      %s24 = sadd.s32 %s23, 1
      %s25 = scalar_select %p22, %s23, %s24
      %p28 = pneg %p22
      %p29 = scmp.eq.s32.totalorder %s13, 1
      %p30 = por %p28, %p29
      %p31 = scmp.ne.s32.totalorder %s23, %s26
      %p32 = scmp.eq.s32.totalorder %s13, 0
      %p33 = por %p31, %p32
      %p34 = scmp.ne.s32.totalorder %s23, %s26
      %p35 = scmp.eq.s32.totalorder %s18, 1
      %p36 = por %p34, %p35
      %p37 = scmp.ne.s32.totalorder %s26, %s27
      %p38 = scmp.eq.s32.totalorder %s18, 0
      %p39 = por %p37, %p38
      %p40 = scmp.ne.s32.totalorder %s26, %s27
      %p41 = scmp.eq.s32.totalorder %s19, 1
      %p42 = por %p40, %p41
      %p44 = scmp.ne.s32.totalorder %s27, %s43
      %p45 = scmp.eq.s32.totalorder %s19, 0
      %p46 = por %p44, %p45
      %s48 = sadd.s32 %s47, 1
      %p51 = scmp.eq.s32.totalorder %s13, 1
      %p52 = scmp.ne.s32.totalorder %s47, %s49
      %p53 = scmp.eq.s32.totalorder %s13, 0
      %p54 = por %p52, %p53
      %p55 = scmp.ne.s32.totalorder %s47, %s49
      %p56 = scmp.eq.s32.totalorder %s18, 1
      %p57 = por %p55, %p56
      %p58 = scmp.ne.s32.totalorder %s49, %s50
      %p59 = scmp.eq.s32.totalorder %s18, 0
      %p60 = por %p58, %p59
      %p61 = scmp.ne.s32.totalorder %s49, %s50
      %p62 = scmp.eq.s32.totalorder %s19, 1
      %p63 = por %p61, %p62
      %p65 = scmp.ne.s32.totalorder %s50, %s64
      %p66 = scmp.eq.s32.totalorder %s19, 0
      %p67 = por %p65, %p66
      %s68 = ssub.s32 %s13, %s20
      %p69 = scmp.eq.s32.totalorder %s68, 0
      %s71 = sadd.s32 %s70, 1
      %s72 = scalar_select %p69, %s70, %s71
      %p75 = pneg %p69
      %p76 = scmp.eq.s32.totalorder %s13, 1
      %p77 = por %p75, %p76
      %p78 = scmp.ne.s32.totalorder %s70, %s73
      %p79 = scmp.eq.s32.totalorder %s13, 0
      %p80 = por %p78, %p79
      %p81 = scmp.ne.s32.totalorder %s70, %s73
      %p82 = scmp.eq.s32.totalorder %s18, 1
      %p83 = por %p81, %p82
      %p84 = scmp.ne.s32.totalorder %s73, %s74
      %p85 = scmp.eq.s32.totalorder %s18, 0
      %p86 = por %p84, %p85
      %p87 = scmp.ne.s32.totalorder %s73, %s74
      %p88 = scmp.eq.s32.totalorder %s19, 1
      %p89 = por %p87, %p88
      %p91 = scmp.ne.s32.totalorder %s74, %s90
      %p92 = scmp.eq.s32.totalorder %s19, 0
      %p93 = por %p91, %p92
      %s94 = ssub.s32 %s13, %s20
      %p95 = scmp.eq.s32.totalorder %s94, 0
      %s97 = sadd.s32 %s96, 1
      %s98 = scalar_select %p95, %s96, %s97
      %p101 = pneg %p95
      %p102 = scmp.eq.s32.totalorder %s13, 1
      %p103 = por %p101, %p102
      %p104 = scmp.ne.s32.totalorder %s96, %s99
      %p105 = scmp.eq.s32.totalorder %s13, 0
      %p106 = por %p104, %p105
      %p107 = scmp.ne.s32.totalorder %s96, %s99
      %p108 = scmp.eq.s32.totalorder %s18, 1
      %p109 = por %p107, %p108
      %p110 = scmp.ne.s32.totalorder %s99, %s100
      %p111 = scmp.eq.s32.totalorder %s18, 0
      %p112 = por %p110, %p111
      %p113 = scmp.ne.s32.totalorder %s99, %s100
      %p114 = scmp.eq.s32.totalorder %s19, 1
      %p115 = por %p113, %p114
      %p117 = scmp.ne.s32.totalorder %s100, %s116
      %p118 = scmp.eq.s32.totalorder %s19, 0
      %p119 = por %p117, %p118
      %s120 = ssub.s32 %s13, %s20
      %p121 = scmp.eq.s32.totalorder %s120, 0
      %s123 = sadd.s32 %s122, 1
      %s124 = scalar_select %p121, %s122, %s123
      %p127 = pneg %p121
      %p128 = scmp.eq.s32.totalorder %s13, 1
      %p129 = por %p127, %p128
      %p130 = scmp.ne.s32.totalorder %s122, %s125
      %p131 = scmp.eq.s32.totalorder %s13, 0
      %p132 = por %p130, %p131
      %p133 = scmp.ne.s32.totalorder %s122, %s125
      %p134 = scmp.eq.s32.totalorder %s18, 1
      %p135 = por %p133, %p134
      %p136 = scmp.ne.s32.totalorder %s125, %s126
      %p137 = scmp.eq.s32.totalorder %s18, 0
      %p138 = por %p136, %p137
      %p139 = scmp.ne.s32.totalorder %s125, %s126
      %p140 = scmp.eq.s32.totalorder %s19, 1
      %p141 = por %p139, %p140
      %p143 = scmp.ne.s32.totalorder %s126, %s142
      %p144 = scmp.eq.s32.totalorder %s19, 0
      %p145 = por %p143, %p144
      %p146 = scmp.le.s32.totalorder 1, %s13
      %p147 = scmp.lt.s32.totalorder %s13, 3
      %p148 = pnand %p146, %p147
      %p149 = pneg %p148
      // Predicated region
      $region9: #{tpu_custom_call.1} parent=5 // pred_check
        _
      $region10: #{tpu_custom_call.1} parent=5 // pred_check_branch
        %151 = sbr.rel (%p148) target = $region12
      $region11: #{tpu_custom_call.1} parent=5 // pred_region
        %s152 = ssub.s32 %s13, 1
        // Predicated region
        $region13: #{tpu_custom_call.1} parent=11 // pred_check
          %p153 = pneg %p60
        $region14: #{tpu_custom_call.1} parent=11 // pred_check_branch
          %155 = sbr.rel (%p153) target = $region16
        $region15: #{tpu_custom_call.1} parent=11 // pred_region
          _
        $region16: #{tpu_custom_call.1} parent=11 // pred_fallthru
          _
      $region12: #{tpu_custom_call.1} parent=5 // pred_fallthru
        _
      %p156 = scmp.lt.s32.totalorder %s13, 2
      // Predicated region
      $region17: #{tpu_custom_call.1} parent=5 // pred_check
        %p157 = pneg %p156
      $region18: #{tpu_custom_call.1} parent=5 // pred_check_branch
        %159 = sbr.rel (%p157) target = $region20
      $region19: #{tpu_custom_call.1} parent=5 // pred_region
        // Predicated region
        $region21: #{tpu_custom_call.1} parent=19 // pred_check
          %p160 = pneg %p33
        $region22: #{tpu_custom_call.1} parent=19 // pred_check_branch
          %162 = sbr.rel (%p160) target = $region24
        $region23: #{tpu_custom_call.1} parent=19 // pred_region
          %s163 = smul.u32 10, %s13
          %p164 = scmp.lt.s32.totalorder %s163, 19
          %s165 = scalar_select %p164, %s163, 19
          %s166 = smul.addr %s165, 8
          %s167 = smul.addr %s166, 4
          %s168 = scalar_lea.vmem %s0, %s167
          %s169 = smul.u32 10, %s13
        $region24: #{tpu_custom_call.1} parent=19 // pred_fallthru
          _
        // Predicated region
        $region25: #{tpu_custom_call.1} parent=19 // pred_check
          %p170 = pneg %p80
        $region26: #{tpu_custom_call.1} parent=19 // pred_check_branch
          %172 = sbr.rel (%p170) target = $region28
        $region27: #{tpu_custom_call.1} parent=19 // pred_region
          %s173 = smul.u32 10, %s13
          %p174 = scmp.lt.s32.totalorder %s173, 19
          %s175 = scalar_select %p174, %s173, 19
          %s176 = smul.addr %s175, 8
          %s177 = scalar_lea.vmem %s2, %s176
          %s178 = smul.u32 10, %s13
        $region28: #{tpu_custom_call.1} parent=19 // pred_fallthru
          _
        // Predicated region
        $region29: #{tpu_custom_call.1} parent=19 // pred_check
          %p179 = pneg %p106
        $region30: #{tpu_custom_call.1} parent=19 // pred_check_branch
          %181 = sbr.rel (%p179) target = $region32
        $region31: #{tpu_custom_call.1} parent=19 // pred_region
          %s182 = smul.u32 10, %s13
          %p183 = scmp.lt.s32.totalorder %s182, 19
          %s184 = scalar_select %p183, %s182, 19
          %s185 = smul.addr %s184, 8
          %s186 = scalar_lea.vmem %s3, %s185
          %s187 = smul.u32 10, %s13
        $region32: #{tpu_custom_call.1} parent=19 // pred_fallthru
          _
      $region20: #{tpu_custom_call.1} parent=5 // pred_fallthru
        _
      %p188 = scmp.le.s32.totalorder 1, %s13
      %p189 = scmp.lt.s32.totalorder %s13, 3
      %p190 = pnand %p188, %p189
      %p191 = pneg %p190
      // Predicated region
      $region33: #{tpu_custom_call.1} parent=5 // pred_check
        _
      $region34: #{tpu_custom_call.1} parent=5 // pred_check_branch
        %193 = sbr.rel (%p190) target = $region36
      $region35: #{tpu_custom_call.1} parent=5 // pred_region
        %s194 = ssub.s32 %s13, 1
        %s195 = smul.u32 10, %s18
        %p196 = scmp.lt.s32.totalorder %s195, 19
        %s197 = scalar_select %p196, %s195, 19
        %s198 = smul.addr %s197, 8
        %s199 = smul.addr %s198, 4
        %s200 = scalar_lea.vmem %s0, %s199
        %p201 = pneg %p39
        %p202 = pneg %p36
        %p203 = pneg %p60
        %p204 = pneg %p57
        %s205 = smul.u32 10, %s18
        %p206 = scmp.lt.s32.totalorder %s205, 19
        %s207 = scalar_select %p206, %s205, 19
        %s208 = smul.addr %s207, 8
        %s209 = scalar_lea.vmem %s2, %s208
        %p210 = pneg %p86
        %p211 = pneg %p83
        %s212 = smul.u32 10, %s18
        %p213 = scmp.lt.s32.totalorder %s212, 19
        %s214 = scalar_select %p213, %s212, 19
        %s215 = smul.addr %s214, 8
        %s216 = scalar_lea.vmem %s3, %s215
        %p217 = pneg %p112
        %p218 = pneg %p109
        %p219 = pneg %p138
        %p220 = pneg %p135
        %s221 = sand.u32 %s125, 1
        %s222 = scalar_lea.sflag [#allocation3], %s221
        %s223 = sand.u32 %s125, 1
        %s224 = smul.addr %s223, 160
        %s225 = scalar_lea.vmem [#allocation2], %s224
        %s226 = smul.u32 10, %s18
        %p227 = scmp.lt.s32.totalorder %s226, 19
        %s228 = scalar_select %p227, %s226, 19
        %s229 = smul.addr %s228, 8
        %s230 = smul.addr %s229, 4
        %s231 = scalar_lea.vmem %s0, %s230
        %s232 = smul.u32 10, %s18
        %s233 = smul.u32 10, %s18
        %p234 = scmp.lt.s32.totalorder %s233, 19
        %s235 = scalar_select %p234, %s233, 19
        %s236 = smul.addr %s235, 8
        %s237 = scalar_lea.vmem %s2, %s236
        %s238 = smul.u32 10, %s18
        %s239 = smul.u32 10, %s18
        %p240 = scmp.lt.s32.totalorder %s239, 19
        %s241 = scalar_select %p240, %s239, 19
        %s242 = smul.addr %s241, 8
        %s243 = scalar_lea.vmem %s3, %s242
        %s244 = smul.u32 10, %s18
        %s245 = smul.u32 10, %s18
        %v247 = vld [vmem:[%s1] sm:$0xff]
        %v248 = vld [vmem:[%s1 + $0x8] sm:$0xff]
        %v249 = vld [vmem:[%s1 + $0x10] sm:$0xff]
        %v250 = vld [vmem:[%s1 + $0x18] sm:$0xff]
        %v251 = vld [vmem:[%s1 + $0x20] sm:$0xff]
        %v252 = vld [vmem:[%s1 + $0x28] sm:$0xff]
        %v253 = vld [vmem:[%s1 + $0x30] sm:$0xff]
        %v254 = vld [vmem:[%s1 + $0x38] sm:$0xff]
        %v255 = vld [vmem:[%s1 + $0x40] sm:$0xff]
        %v256 = vld [vmem:[%s1 + $0x48] sm:$0xff]
        %v257 = vld [vmem:[%s1 + $0x50] sm:$0xff]
        %v258 = vld [vmem:[%s1 + $0x58] sm:$0xff]
        %v259 = vld [vmem:[%s1 + $0x60] sm:$0xff]
        %v260 = vld [vmem:[%s1 + $0x68] sm:$0xff]
        %v261 = vld [vmem:[%s1 + $0x70] sm:$0xff]
        %v262 = vld [vmem:[%s1 + $0x78] sm:$0xff]
        %v263 = vld [vmem:[%s1 + $0x80] sm:$0xff]
        %v264 = vld [vmem:[%s1 + $0x88] sm:$0xff]
        %v265 = vld [vmem:[%s1 + $0x90] sm:$0xff]
        %v266 = vld [vmem:[%s1 + $0x98] sm:$0xff]
        %v267 = vld [vmem:[%s1 + $0xa0] sm:$0xff]
        %v268 = vld [vmem:[%s1 + $0xa8] sm:$0xff]
        %v269 = vld [vmem:[%s1 + $0xb0] sm:$0xff]
        %v270 = vld [vmem:[%s1 + $0xb8] sm:$0xff]
        %v271 = vld [vmem:[%s1 + $0xc0] sm:$0xff]
        %v272 = vld [vmem:[%s1 + $0xc8] sm:$0xff]
        %v273 = vld [vmem:[%s1 + $0xd0] sm:$0xff]
        %v274 = vld [vmem:[%s1 + $0xd8] sm:$0xff]
        %v275 = vld [vmem:[%s1 + $0xe0] sm:$0xff]
        %v276 = vld [vmem:[%s1 + $0xe8] sm:$0xff]
        %v277 = vld [vmem:[%s1 + $0xf0] sm:$0xff]
        %v278 = vld [vmem:[%s1 + $0xf8] sm:$0xff]
        %v279 = vld [vmem:[%s1 + $0x100] sm:$0xff]
        %v280 = vld [vmem:[%s1 + $0x108] sm:$0xff]
        %v281 = vld [vmem:[%s1 + $0x110] sm:$0xff]
        %v282 = vld [vmem:[%s1 + $0x118] sm:$0xff]
        %v283 = vld [vmem:[%s1 + $0x120] sm:$0xff]
        %v284 = vld [vmem:[%s1 + $0x128] sm:$0xff]
        %v285 = vld [vmem:[%s1 + $0x130] sm:$0xff]
        %v286 = vld [vmem:[%s1 + $0x138] sm:$0xff]
        %v287 = vld [vmem:[%s1 + $0x140] sm:$0xff]
        %v288 = vld [vmem:[%s1 + $0x148] sm:$0xff]
        %v289 = vld [vmem:[%s1 + $0x150] sm:$0xff]
        %v290 = vld [vmem:[%s1 + $0x158] sm:$0xff]
        %v291 = vld [vmem:[%s1 + $0x160] sm:$0xff]
        %v292 = vld [vmem:[%s1 + $0x168] sm:$0xff]
        %v293 = vld [vmem:[%s1 + $0x170] sm:$0xff]
        %v294 = vld [vmem:[%s1 + $0x178] sm:$0xff]
        %v295 = vld [vmem:[%s1 + $0x180] sm:$0xff]
        %v296 = vld [vmem:[%s1 + $0x188] sm:$0xff]
        %v297 = vld [vmem:[%s1 + $0x190] sm:$0xff]
        %v298 = vld [vmem:[%s1 + $0x198] sm:$0xff]
        %v299 = vld [vmem:[%s1 + $0x1a0] sm:$0xff]
        %v300 = vld [vmem:[%s1 + $0x1a8] sm:$0xff]
        %v301 = vld [vmem:[%s1 + $0x1b0] sm:$0xff]
        %v302 = vld [vmem:[%s1 + $0x1b8] sm:$0xff]
        %v303 = vld [vmem:[%s1 + $0x1c0] sm:$0xff]
        %v304 = vld [vmem:[%s1 + $0x1c8] sm:$0xff]
        %v305 = vld [vmem:[%s1 + $0x1d0] sm:$0xff]
        %v306 = vld [vmem:[%s1 + $0x1d8] sm:$0xff]
        %v307 = vld [vmem:[%s1 + $0x1e0] sm:$0xff]
        %v308 = vld [vmem:[%s1 + $0x1e8] sm:$0xff]
        %v309 = vld [vmem:[%s1 + $0x1f0] sm:$0xff]
        %v310 = vld [vmem:[%s1 + $0x1f8] sm:$0xff]
        %v311 = vld [vmem:[%s1 + $0x200] sm:$0xff]
        %v312 = vld [vmem:[%s1 + $0x208] sm:$0xff]
        %v313 = vld [vmem:[%s1 + $0x210] sm:$0xff]
        %v314 = vld [vmem:[%s1 + $0x218] sm:$0xff]
        %v315 = vld [vmem:[%s1 + $0x220] sm:$0xff]
        %v316 = vld [vmem:[%s1 + $0x228] sm:$0xff]
        %v317 = vld [vmem:[%s1 + $0x230] sm:$0xff]
        %v318 = vld [vmem:[%s1 + $0x238] sm:$0xff]
        %v319 = vld [vmem:[%s1 + $0x240] sm:$0xff]
        %v320 = vld [vmem:[%s1 + $0x248] sm:$0xff]
        %v321 = vld [vmem:[%s1 + $0x250] sm:$0xff]
        %v322 = vld [vmem:[%s1 + $0x258] sm:$0xff]
        %v323 = vld [vmem:[%s1 + $0x260] sm:$0xff]
        %v324 = vld [vmem:[%s1 + $0x268] sm:$0xff]
        %v325 = vld [vmem:[%s1 + $0x270] sm:$0xff]
        %v326 = vld [vmem:[%s1 + $0x278] sm:$0xff]
        %v327 = vld [vmem:[%s1 + $0x280] sm:$0xff]
        %v328 = vld [vmem:[%s1 + $0x288] sm:$0xff]
        %v329 = vld [vmem:[%s1 + $0x290] sm:$0xff]
        %v330 = vld [vmem:[%s1 + $0x298] sm:$0xff]
        %v331 = vld [vmem:[%s1 + $0x2a0] sm:$0xff]
        %v332 = vld [vmem:[%s1 + $0x2a8] sm:$0xff]
        %v333 = vld [vmem:[%s1 + $0x2b0] sm:$0xff]
        %v334 = vld [vmem:[%s1 + $0x2b8] sm:$0xff]
        %v335 = vld [vmem:[%s1 + $0x2c0] sm:$0xff]
        %v336 = vld [vmem:[%s1 + $0x2c8] sm:$0xff]
        %v337 = vld [vmem:[%s1 + $0x2d0] sm:$0xff]
        %v338 = vld [vmem:[%s1 + $0x2d8] sm:$0xff]
        %v339 = vld [vmem:[%s1 + $0x2e0] sm:$0xff]
        %v340 = vld [vmem:[%s1 + $0x2e8] sm:$0xff]
        %v341 = vld [vmem:[%s1 + $0x2f0] sm:$0xff]
        %v342 = vld [vmem:[%s1 + $0x2f8] sm:$0xff]
        %v343 = vld [vmem:[%s1 + $0x300] sm:$0xff]
        %v344 = vld [vmem:[%s1 + $0x308] sm:$0xff]
        %v345 = vld [vmem:[%s1 + $0x310] sm:$0xff]
        %v346 = vld [vmem:[%s1 + $0x318] sm:$0xff]
        %v347 = vld [vmem:[%s1 + $0x320] sm:$0xff]
        %v348 = vld [vmem:[%s1 + $0x328] sm:$0xff]
        %v349 = vld [vmem:[%s1 + $0x330] sm:$0xff]
        %v350 = vld [vmem:[%s1 + $0x338] sm:$0xff]
        %v351 = vld [vmem:[%s1 + $0x340] sm:$0xff]
        %v352 = vld [vmem:[%s1 + $0x348] sm:$0xff]
        %v353 = vld [vmem:[%s1 + $0x350] sm:$0xff]
        %v354 = vld [vmem:[%s1 + $0x358] sm:$0xff]
        %v355 = vld [vmem:[%s1 + $0x360] sm:$0xff]
        %v356 = vld [vmem:[%s1 + $0x368] sm:$0xff]
        %v357 = vld [vmem:[%s1 + $0x370] sm:$0xff]
        %v358 = vld [vmem:[%s1 + $0x378] sm:$0xff]
        %v359 = vld [vmem:[%s1 + $0x380] sm:$0xff]
        %v360 = vld [vmem:[%s1 + $0x388] sm:$0xff]
        %v361 = vld [vmem:[%s1 + $0x390] sm:$0xff]
        %v362 = vld [vmem:[%s1 + $0x398] sm:$0xff]
        %v363 = vld [vmem:[%s1 + $0x3a0] sm:$0xff]
        %v364 = vld [vmem:[%s1 + $0x3a8] sm:$0xff]
        %v365 = vld [vmem:[%s1 + $0x3b0] sm:$0xff]
        %v366 = vld [vmem:[%s1 + $0x3b8] sm:$0xff]
        %v367 = vld [vmem:[%s1 + $0x3c0] sm:$0xff]
        %v368 = vld [vmem:[%s1 + $0x3c8] sm:$0xff]
        %v369 = vld [vmem:[%s1 + $0x3d0] sm:$0xff]
        %v370 = vld [vmem:[%s1 + $0x3d8] sm:$0xff]
        %v371 = vld [vmem:[%s1 + $0x3e0] sm:$0xff]
        %v372 = vld [vmem:[%s1 + $0x3e8] sm:$0xff]
        %v373 = vld [vmem:[%s1 + $0x3f0] sm:$0xff]
        %v374 = vld [vmem:[%s1 + $0x3f8] sm:$0xff]
        %v375 = vld [vmem:[%s1 + $0x400] sm:$0xff]
        %v376 = vld [vmem:[%s1 + $0x408] sm:$0xff]
        %v377 = vld [vmem:[%s1 + $0x410] sm:$0xff]
        %v378 = vld [vmem:[%s1 + $0x418] sm:$0xff]
        %v379 = vld [vmem:[%s1 + $0x420] sm:$0xff]
        %v380 = vld [vmem:[%s1 + $0x428] sm:$0xff]
        %v381 = vld [vmem:[%s1 + $0x430] sm:$0xff]
        %v382 = vld [vmem:[%s1 + $0x438] sm:$0xff]
        %v383 = vld [vmem:[%s1 + $0x440] sm:$0xff]
        %v384 = vld [vmem:[%s1 + $0x448] sm:$0xff]
        %v385 = vld [vmem:[%s1 + $0x450] sm:$0xff]
        %v386 = vld [vmem:[%s1 + $0x458] sm:$0xff]
        %v387 = vld [vmem:[%s1 + $0x460] sm:$0xff]
        %v388 = vld [vmem:[%s1 + $0x468] sm:$0xff]
        %v389 = vld [vmem:[%s1 + $0x470] sm:$0xff]
        %v390 = vld [vmem:[%s1 + $0x478] sm:$0xff]
        %v391 = vld [vmem:[%s1 + $0x480] sm:$0xff]
        %v392 = vld [vmem:[%s1 + $0x488] sm:$0xff]
        %v393 = vld [vmem:[%s1 + $0x490] sm:$0xff]
        %v394 = vld [vmem:[%s1 + $0x498] sm:$0xff]
        %v395 = vld [vmem:[%s1 + $0x4a0] sm:$0xff]
        %v396 = vld [vmem:[%s1 + $0x4a8] sm:$0xff]
        %v397 = vld [vmem:[%s1 + $0x4b0] sm:$0xff]
        %v398 = vld [vmem:[%s1 + $0x4b8] sm:$0xff]
        %v399 = vld [vmem:[%s1 + $0x4c0] sm:$0xff]
        %v400 = vld [vmem:[%s1 + $0x4c8] sm:$0xff]
        %v401 = vld [vmem:[%s1 + $0x4d0] sm:$0xff]
        %v402 = vld [vmem:[%s1 + $0x4d8] sm:$0xff]
        %v403 = vld [vmem:[%s1 + $0x4e0] sm:$0xff]
        %v404 = vld [vmem:[%s1 + $0x4e8] sm:$0xff]
        %v405 = vld [vmem:[%s1 + $0x4f0] sm:$0xff]
        %v406 = vld [vmem:[%s1 + $0x4f8] sm:$0xff]
        %v407 = vld [vmem:[%s1 + $0x500] sm:$0xff]
        %v408 = vld [vmem:[%s1 + $0x508] sm:$0xff]
        %v409 = vld [vmem:[%s1 + $0x510] sm:$0xff]
        %v410 = vld [vmem:[%s1 + $0x518] sm:$0xff]
        %v411 = vld [vmem:[%s1 + $0x520] sm:$0xff]
        %v412 = vld [vmem:[%s1 + $0x528] sm:$0xff]
        %v413 = vld [vmem:[%s1 + $0x530] sm:$0xff]
        %v414 = vld [vmem:[%s1 + $0x538] sm:$0xff]
        %v415 = vld [vmem:[%s1 + $0x540] sm:$0xff]
        %v416 = vld [vmem:[%s1 + $0x548] sm:$0xff]
        %v417 = vld [vmem:[%s1 + $0x550] sm:$0xff]
        %v418 = vld [vmem:[%s1 + $0x558] sm:$0xff]
        %v419 = vld [vmem:[%s1 + $0x560] sm:$0xff]
        %v420 = vld [vmem:[%s1 + $0x568] sm:$0xff]
        %v421 = vld [vmem:[%s1 + $0x570] sm:$0xff]
        %v422 = vld [vmem:[%s1 + $0x578] sm:$0xff]
        %v423 = vld [vmem:[%s1 + $0x580] sm:$0xff]
        %v424 = vld [vmem:[%s1 + $0x588] sm:$0xff]
        %v425 = vld [vmem:[%s1 + $0x590] sm:$0xff]
        %v426 = vld [vmem:[%s1 + $0x598] sm:$0xff]
        %v427 = vld [vmem:[%s1 + $0x5a0] sm:$0xff]
        %v428 = vld [vmem:[%s1 + $0x5a8] sm:$0xff]
        %v429 = vld [vmem:[%s1 + $0x5b0] sm:$0xff]
        %v430 = vld [vmem:[%s1 + $0x5b8] sm:$0xff]
        %v431 = vld [vmem:[%s1 + $0x5c0] sm:$0xff]
        %v432 = vld [vmem:[%s1 + $0x5c8] sm:$0xff]
        %v433 = vld [vmem:[%s1 + $0x5d0] sm:$0xff]
        %v434 = vld [vmem:[%s1 + $0x5d8] sm:$0xff]
        %v435 = vld [vmem:[%s1 + $0x5e0] sm:$0xff]
        %v436 = vld [vmem:[%s1 + $0x5e8] sm:$0xff]
        %v437 = vld [vmem:[%s1 + $0x5f0] sm:$0xff]
        %v438 = vld [vmem:[%s1 + $0x5f8] sm:$0xff]
        %v439 = vld [vmem:[%s1 + $0x600] sm:$0xff]
        %v440 = vld [vmem:[%s1 + $0x608] sm:$0xff]
        %v441 = vld [vmem:[%s1 + $0x610] sm:$0xff]
        %v442 = vld [vmem:[%s1 + $0x618] sm:$0xff]
        %v443 = vld [vmem:[%s1 + $0x620] sm:$0xff]
        %v444 = vld [vmem:[%s1 + $0x628] sm:$0xff]
        %v445 = vld [vmem:[%s1 + $0x630] sm:$0xff]
        %v446 = vld [vmem:[%s1 + $0x638] sm:$0xff]
        %v447 = vld [vmem:[%s1 + $0x640] sm:$0xff]
        %v448 = vld [vmem:[%s1 + $0x648] sm:$0xff]
        %v449 = vld [vmem:[%s1 + $0x650] sm:$0xff]
        %v450 = vld [vmem:[%s1 + $0x658] sm:$0xff]
        %v451 = vld [vmem:[%s1 + $0x660] sm:$0xff]
        %v452 = vld [vmem:[%s1 + $0x668] sm:$0xff]
        %v453 = vld [vmem:[%s1 + $0x670] sm:$0xff]
        %v454 = vld [vmem:[%s1 + $0x678] sm:$0xff]
        %v455 = vld [vmem:[%s1 + $0x680] sm:$0xff]
        %v456 = vld [vmem:[%s1 + $0x688] sm:$0xff]
        %v457 = vld [vmem:[%s1 + $0x690] sm:$0xff]
        %v458 = vld [vmem:[%s1 + $0x698] sm:$0xff]
        %v459 = vld [vmem:[%s1 + $0x6a0] sm:$0xff]
        %v460 = vld [vmem:[%s1 + $0x6a8] sm:$0xff]
        %v461 = vld [vmem:[%s1 + $0x6b0] sm:$0xff]
        %v462 = vld [vmem:[%s1 + $0x6b8] sm:$0xff]
        %v463 = vld [vmem:[%s1 + $0x6c0] sm:$0xff]
        %v464 = vld [vmem:[%s1 + $0x6c8] sm:$0xff]
        %v465 = vld [vmem:[%s1 + $0x6d0] sm:$0xff]
        %v466 = vld [vmem:[%s1 + $0x6d8] sm:$0xff]
        %v467 = vld [vmem:[%s1 + $0x6e0] sm:$0xff]
        %v468 = vld [vmem:[%s1 + $0x6e8] sm:$0xff]
        %v469 = vld [vmem:[%s1 + $0x6f0] sm:$0xff]
        %v470 = vld [vmem:[%s1 + $0x6f8] sm:$0xff]
        %v471 = vld [vmem:[%s1 + $0x700] sm:$0xff]
        %v472 = vld [vmem:[%s1 + $0x708] sm:$0xff]
        %v473 = vld [vmem:[%s1 + $0x710] sm:$0xff]
        %v474 = vld [vmem:[%s1 + $0x718] sm:$0xff]
        %v475 = vld [vmem:[%s1 + $0x720] sm:$0xff]
        %v476 = vld [vmem:[%s1 + $0x728] sm:$0xff]
        %v477 = vld [vmem:[%s1 + $0x730] sm:$0xff]
        %v478 = vld [vmem:[%s1 + $0x738] sm:$0xff]
        %v479 = vld [vmem:[%s1 + $0x740] sm:$0xff]
        %v480 = vld [vmem:[%s1 + $0x748] sm:$0xff]
        %v481 = vld [vmem:[%s1 + $0x750] sm:$0xff]
        %v482 = vld [vmem:[%s1 + $0x758] sm:$0xff]
        %v483 = vld [vmem:[%s1 + $0x760] sm:$0xff]
        %v484 = vld [vmem:[%s1 + $0x768] sm:$0xff]
        %v485 = vld [vmem:[%s1 + $0x770] sm:$0xff]
        %v486 = vld [vmem:[%s1 + $0x778] sm:$0xff]
        %v487 = vpack.c.bf16 %v249, %v247
        %v488 = vpack.c.bf16 %v250, %v248
        %v489 = vpack.c.bf16 %v253, %v251
        %v490 = vpack.c.bf16 %v254, %v252
        %v491 = vpack.c.bf16 %v257, %v255
        %v492 = vpack.c.bf16 %v258, %v256
        %v493 = vpack.c.bf16 %v261, %v259
        %v494 = vpack.c.bf16 %v262, %v260
        %v495 = vpack.c.bf16 %v265, %v263
        %v496 = vpack.c.bf16 %v266, %v264
        %v497 = vpack.c.bf16 %v269, %v267
        %v498 = vpack.c.bf16 %v270, %v268
        %v499 = vpack.c.bf16 %v273, %v271
        %v500 = vpack.c.bf16 %v274, %v272
        %v501 = vpack.c.bf16 %v277, %v275
        %v502 = vpack.c.bf16 %v278, %v276
        %v503 = vpack.c.bf16 %v281, %v279
        %v504 = vpack.c.bf16 %v282, %v280
        %v505 = vpack.c.bf16 %v285, %v283
        %v506 = vpack.c.bf16 %v286, %v284
        %v507 = vpack.c.bf16 %v289, %v287
        %v508 = vpack.c.bf16 %v290, %v288
        %v509 = vpack.c.bf16 %v293, %v291
        %v510 = vpack.c.bf16 %v294, %v292
        %v511 = vpack.c.bf16 %v297, %v295
        %v512 = vpack.c.bf16 %v298, %v296
        %v513 = vpack.c.bf16 %v301, %v299
        %v514 = vpack.c.bf16 %v302, %v300
        %v515 = vpack.c.bf16 %v305, %v303
        %v516 = vpack.c.bf16 %v306, %v304
        %v517 = vpack.c.bf16 %v309, %v307
        %v518 = vpack.c.bf16 %v310, %v308
        %v519 = vpack.c.bf16 %v313, %v311
        %v520 = vpack.c.bf16 %v314, %v312
        %v521 = vpack.c.bf16 %v317, %v315
        %v522 = vpack.c.bf16 %v318, %v316
        %v523 = vpack.c.bf16 %v321, %v319
        %v524 = vpack.c.bf16 %v322, %v320
        %v525 = vpack.c.bf16 %v325, %v323
        %v526 = vpack.c.bf16 %v326, %v324
        %v527 = vpack.c.bf16 %v329, %v327
        %v528 = vpack.c.bf16 %v330, %v328
        %v529 = vpack.c.bf16 %v333, %v331
        %v530 = vpack.c.bf16 %v334, %v332
        %v531 = vpack.c.bf16 %v337, %v335
        %v532 = vpack.c.bf16 %v338, %v336
        %v533 = vpack.c.bf16 %v341, %v339
        %v534 = vpack.c.bf16 %v342, %v340
        %v535 = vpack.c.bf16 %v345, %v343
        %v536 = vpack.c.bf16 %v346, %v344
        %v537 = vpack.c.bf16 %v349, %v347
        %v538 = vpack.c.bf16 %v350, %v348
        %v539 = vpack.c.bf16 %v353, %v351
        %v540 = vpack.c.bf16 %v354, %v352
        %v541 = vpack.c.bf16 %v357, %v355
        %v542 = vpack.c.bf16 %v358, %v356
        %v543 = vpack.c.bf16 %v361, %v359
        %v544 = vpack.c.bf16 %v362, %v360
        %v545 = vpack.c.bf16 %v365, %v363
        %v546 = vpack.c.bf16 %v366, %v364
        %v547 = vpack.c.bf16 %v369, %v367
        %v548 = vpack.c.bf16 %v370, %v368
        %v549 = vpack.c.bf16 %v373, %v371
        %v550 = vpack.c.bf16 %v374, %v372
        %v551 = vpack.c.bf16 %v377, %v375
        %v552 = vpack.c.bf16 %v378, %v376
        %v553 = vpack.c.bf16 %v381, %v379
        %v554 = vpack.c.bf16 %v382, %v380
        %v555 = vpack.c.bf16 %v385, %v383
        %v556 = vpack.c.bf16 %v386, %v384
        %v557 = vpack.c.bf16 %v389, %v387
        %v558 = vpack.c.bf16 %v390, %v388
        %v559 = vpack.c.bf16 %v393, %v391
        %v560 = vpack.c.bf16 %v394, %v392
        %v561 = vpack.c.bf16 %v397, %v395
        %v562 = vpack.c.bf16 %v398, %v396
        %v563 = vpack.c.bf16 %v401, %v399
        %v564 = vpack.c.bf16 %v402, %v400
        %v565 = vpack.c.bf16 %v405, %v403
        %v566 = vpack.c.bf16 %v406, %v404
        %v567 = vpack.c.bf16 %v409, %v407
        %v568 = vpack.c.bf16 %v410, %v408
        %v569 = vpack.c.bf16 %v413, %v411
        %v570 = vpack.c.bf16 %v414, %v412
        %v571 = vpack.c.bf16 %v417, %v415
        %v572 = vpack.c.bf16 %v418, %v416
        %v573 = vpack.c.bf16 %v421, %v419
        %v574 = vpack.c.bf16 %v422, %v420
        %v575 = vpack.c.bf16 %v425, %v423
        %v576 = vpack.c.bf16 %v426, %v424
        %v577 = vpack.c.bf16 %v429, %v427
        %v578 = vpack.c.bf16 %v430, %v428
        %v579 = vpack.c.bf16 %v433, %v431
        %v580 = vpack.c.bf16 %v434, %v432
        %v581 = vpack.c.bf16 %v437, %v435
        %v582 = vpack.c.bf16 %v438, %v436
        %v583 = vpack.c.bf16 %v441, %v439
        %v584 = vpack.c.bf16 %v442, %v440
        %v585 = vpack.c.bf16 %v445, %v443
        %v586 = vpack.c.bf16 %v446, %v444
        %v587 = vpack.c.bf16 %v449, %v447
        %v588 = vpack.c.bf16 %v450, %v448
        %v589 = vpack.c.bf16 %v453, %v451
        %v590 = vpack.c.bf16 %v454, %v452
        %v591 = vpack.c.bf16 %v457, %v455
        %v592 = vpack.c.bf16 %v458, %v456
        %v593 = vpack.c.bf16 %v461, %v459
        %v594 = vpack.c.bf16 %v462, %v460
        %v595 = vpack.c.bf16 %v465, %v463
        %v596 = vpack.c.bf16 %v466, %v464
        %v597 = vpack.c.bf16 %v469, %v467
        %v598 = vpack.c.bf16 %v470, %v468
        %v599 = vpack.c.bf16 %v473, %v471
        %v600 = vpack.c.bf16 %v474, %v472
        %v601 = vpack.c.bf16 %v477, %v475
        %v602 = vpack.c.bf16 %v478, %v476
        %v603 = vpack.c.bf16 %v481, %v479
        %v604 = vpack.c.bf16 %v482, %v480
        %v605 = vpack.c.bf16 %v485, %v483
        %v606 = vpack.c.bf16 %v486, %v484
        %v607 = vld [vmem:[%s231] sm:$0xff]
        %v608 = vld [vmem:[%s231 + $0x8] sm:$0xff]
        %v609 = vld [vmem:[%s231 + $0x10] sm:$0xff]
        %v610 = vld [vmem:[%s231 + $0x18] sm:$0xff]
        %v611 = vld [vmem:[%s231 + $0x20] sm:$0xff]
        %v612 = vld [vmem:[%s231 + $0x28] sm:$0xff]
        %v613 = vld [vmem:[%s231 + $0x30] sm:$0xff]
        %v614 = vld [vmem:[%s231 + $0x38] sm:$0xff]
        %v615 = vld [vmem:[%s231 + $0x40] sm:$0xff]
        %v616 = vld [vmem:[%s231 + $0x48] sm:$0xff]
        %v617 = vld [vmem:[%s231 + $0x50] sm:$0xff]
        %v618 = vld [vmem:[%s231 + $0x58] sm:$0xff]
        %v619 = vld [vmem:[%s231 + $0x60] sm:$0xff]
        %v620 = vld [vmem:[%s231 + $0x68] sm:$0xff]
        %v621 = vld [vmem:[%s231 + $0x70] sm:$0xff]
        %v622 = vld [vmem:[%s231 + $0x78] sm:$0xff]
        %v623 = vld [vmem:[%s231 + $0x80] sm:$0xff]
        %v624 = vld [vmem:[%s231 + $0x88] sm:$0xff]
        %v625 = vld [vmem:[%s231 + $0x90] sm:$0xff]
        %v626 = vld [vmem:[%s231 + $0x98] sm:$0xff]
        %v627 = vld [vmem:[%s231 + $0xa0] sm:$0xff]
        %v628 = vld [vmem:[%s231 + $0xa8] sm:$0xff]
        %v629 = vld [vmem:[%s231 + $0xb0] sm:$0xff]
        %v630 = vld [vmem:[%s231 + $0xb8] sm:$0xff]
        %v631 = vld [vmem:[%s231 + $0xc0] sm:$0xff]
        %v632 = vld [vmem:[%s231 + $0xc8] sm:$0xff]
        %v633 = vld [vmem:[%s231 + $0xd0] sm:$0xff]
        %v634 = vld [vmem:[%s231 + $0xd8] sm:$0xff]
        %v635 = vld [vmem:[%s231 + $0xe0] sm:$0xff]
        %v636 = vld [vmem:[%s231 + $0xe8] sm:$0xff]
        %v637 = vld [vmem:[%s231 + $0xf0] sm:$0xff]
        %v638 = vld [vmem:[%s231 + $0xf8] sm:$0xff]
        %v639 = vld [vmem:[%s231 + $0x100] sm:$0xff]
        %v640 = vld [vmem:[%s231 + $0x108] sm:$0xff]
        %v641 = vld [vmem:[%s231 + $0x110] sm:$0xff]
        %v642 = vld [vmem:[%s231 + $0x118] sm:$0xff]
        %v643 = vld [vmem:[%s231 + $0x120] sm:$0xff]
        %v644 = vld [vmem:[%s231 + $0x128] sm:$0xff]
        %v645 = vld [vmem:[%s231 + $0x130] sm:$0xff]
        %v646 = vld [vmem:[%s231 + $0x138] sm:$0xff]
        %v687 = vunpack.c.l.b16 %v607
        %v688 = vunpack.c.h.b16 %v607
        %v689 = vunpack.c.l.b16 %v608
        %v690 = vunpack.c.h.b16 %v608
        %v691 = vunpack.c.l.b16 %v609
        %v692 = vunpack.c.h.b16 %v609
        %v693 = vunpack.c.l.b16 %v610
        %v694 = vunpack.c.h.b16 %v610
        %v695 = vunpack.c.l.b16 %v611
        %v696 = vunpack.c.h.b16 %v611
        %v697 = vunpack.c.l.b16 %v612
        %v698 = vunpack.c.h.b16 %v612
        %v699 = vunpack.c.l.b16 %v613
        %v700 = vunpack.c.h.b16 %v613
        %v701 = vunpack.c.l.b16 %v614
        %v702 = vunpack.c.h.b16 %v614
        %v703 = vunpack.c.l.b16 %v615
        %v704 = vunpack.c.h.b16 %v615
        %v705 = vunpack.c.l.b16 %v616
        %v706 = vunpack.c.h.b16 %v616
        %v707 = vunpack.c.l.b16 %v617
        %v708 = vunpack.c.h.b16 %v617
        %v709 = vunpack.c.l.b16 %v618
        %v710 = vunpack.c.h.b16 %v618
        %v711 = vunpack.c.l.b16 %v619
        %v712 = vunpack.c.h.b16 %v619
        %v713 = vunpack.c.l.b16 %v620
        %v714 = vunpack.c.h.b16 %v620
        %v715 = vunpack.c.l.b16 %v621
        %v716 = vunpack.c.h.b16 %v621
        %v717 = vunpack.c.l.b16 %v622
        %v718 = vunpack.c.h.b16 %v622
        %v719 = vunpack.c.l.b16 %v623
        %v720 = vunpack.c.h.b16 %v623
        %v721 = vunpack.c.l.b16 %v624
        %v722 = vunpack.c.h.b16 %v624
        %v723 = vunpack.c.l.b16 %v625
        %v724 = vunpack.c.h.b16 %v625
        %v725 = vunpack.c.l.b16 %v626
        %v726 = vunpack.c.h.b16 %v626
        %v727 = vunpack.c.l.b16 %v627
        %v728 = vunpack.c.h.b16 %v627
        %v729 = vunpack.c.l.b16 %v628
        %v730 = vunpack.c.h.b16 %v628
        %v731 = vunpack.c.l.b16 %v629
        %v732 = vunpack.c.h.b16 %v629
        %v733 = vunpack.c.l.b16 %v630
        %v734 = vunpack.c.h.b16 %v630
        %v735 = vunpack.c.l.b16 %v631
        %v736 = vunpack.c.h.b16 %v631
        %v737 = vunpack.c.l.b16 %v632
        %v738 = vunpack.c.h.b16 %v632
        %v739 = vunpack.c.l.b16 %v633
        %v740 = vunpack.c.h.b16 %v633
        %v741 = vunpack.c.l.b16 %v634
        %v742 = vunpack.c.h.b16 %v634
        %v743 = vunpack.c.l.b16 %v635
        %v744 = vunpack.c.h.b16 %v635
        %v745 = vunpack.c.l.b16 %v636
        %v746 = vunpack.c.h.b16 %v636
        %v747 = vunpack.c.l.b16 %v637
        %v748 = vunpack.c.h.b16 %v637
        %v749 = vunpack.c.l.b16 %v638
        %v750 = vunpack.c.h.b16 %v638
        %v751 = vunpack.c.l.b16 %v639
        %v752 = vunpack.c.h.b16 %v639
        %v753 = vunpack.c.l.b16 %v640
        %v754 = vunpack.c.h.b16 %v640
        %v755 = vunpack.c.l.b16 %v641
        %v756 = vunpack.c.h.b16 %v641
        %v757 = vunpack.c.l.b16 %v642
        %v758 = vunpack.c.h.b16 %v642
        %v759 = vunpack.c.l.b16 %v643
        %v760 = vunpack.c.h.b16 %v643
        %v761 = vunpack.c.l.b16 %v644
        %v762 = vunpack.c.h.b16 %v644
        %v763 = vunpack.c.l.b16 %v645
        %v764 = vunpack.c.h.b16 %v645
        %v765 = vunpack.c.l.b16 %v646
        %v766 = vunpack.c.h.b16 %v646
        %v767 = vpack.c.b16 %v695, %v687
        %v768 = vpack.c.b16 %v696, %v688
        %v769 = vpack.c.b16 %v697, %v689
        %v770 = vpack.c.b16 %v698, %v690
        %v771 = vpack.c.b16 %v699, %v691
        %v772 = vpack.c.b16 %v700, %v692
        %v773 = vpack.c.b16 %v701, %v693
        %v774 = vpack.c.b16 %v702, %v694
        %v775 = vpack.c.b16 %v711, %v703
        %v776 = vpack.c.b16 %v712, %v704
        %v777 = vpack.c.b16 %v713, %v705
        %v778 = vpack.c.b16 %v714, %v706
        %v779 = vpack.c.b16 %v715, %v707
        %v780 = vpack.c.b16 %v716, %v708
        %v781 = vpack.c.b16 %v717, %v709
        %v782 = vpack.c.b16 %v718, %v710
        %v783 = vpack.c.b16 %v727, %v719
        %v784 = vpack.c.b16 %v728, %v720
        %v785 = vpack.c.b16 %v729, %v721
        %v786 = vpack.c.b16 %v730, %v722
        %v787 = vpack.c.b16 %v731, %v723
        %v788 = vpack.c.b16 %v732, %v724
        %v789 = vpack.c.b16 %v733, %v725
        %v790 = vpack.c.b16 %v734, %v726
        %v791 = vpack.c.b16 %v743, %v735
        %v792 = vpack.c.b16 %v744, %v736
        %v793 = vpack.c.b16 %v745, %v737
        %v794 = vpack.c.b16 %v746, %v738
        %v795 = vpack.c.b16 %v747, %v739
        %v796 = vpack.c.b16 %v748, %v740
        %v797 = vpack.c.b16 %v749, %v741
        %v798 = vpack.c.b16 %v750, %v742
        %v799 = vpack.c.b16 %v759, %v751
        %v800 = vpack.c.b16 %v760, %v752
        %v801 = vpack.c.b16 %v761, %v753
        %v802 = vpack.c.b16 %v762, %v754
        %v803 = vpack.c.b16 %v763, %v755
        %v804 = vpack.c.b16 %v764, %v756
        %v805 = vpack.c.b16 %v765, %v757
        %v806 = vpack.c.b16 %v766, %v758
        %vm842 = vcmask 523264
        %v844 = vsel %vm842, %v774, 0
        %v847 = vsel %vm842, %v782, 0
        %v850 = vsel %vm842, %v790, 0
        %v853 = vsel %vm842, %v798, 0
        %v856 = vsel %vm842, %v806, 0
        %858 = vmatprep.subr.bf16.mxu0 %v488
        %859 = vmatpush1.bf16.msra.mxu0 %v487
        %860 = vmatprep.subr.bf16.mxu0 %v490
        %861 = vmatpush1.bf16.msra.mxu0 %v489
        %862 = vmatprep.subr.bf16.mxu0 %v492
        %863 = vmatpush1.bf16.msra.mxu0 %v491
        %864 = vmatprep.subr.bf16.mxu0 %v494
        %865 = vmatpush1.bf16.msra.mxu0 %v493
        %866 = vmatprep.subr.bf16.mxu0 %v496
        %867 = vmatpush1.bf16.msra.mxu0 %v495
        %868 = vmatprep.subr.bf16.mxu0 %v498
        %869 = vmatpush1.bf16.msra.mxu0 %v497
        %870 = vmatprep.subr.bf16.mxu0 %v500
        %871 = vmatpush1.bf16.msra.mxu0 %v499
        %872 = vmatprep.subr.bf16.mxu0 %v502
        %873 = vmatpush1.bf16.msra.mxu0 %v501
        %874 = vmatprep.subr.bf16.mxu0 %v504
        %875 = vmatpush1.bf16.msra.mxu0 %v503
        %876 = vmatprep.subr.bf16.mxu0 %v506
        %877 = vmatpush1.bf16.msra.mxu0 %v505
        %878 = vmatprep.subr.bf16.mxu0 %v508
        %879 = vmatpush1.bf16.msra.mxu0 %v507
        %880 = vmatprep.subr.bf16.mxu0 %v510
        %881 = vmatpush1.bf16.msra.mxu0 %v509
        %882 = vmatprep.subr.bf16.mxu0 %v512
        %883 = vmatpush1.bf16.msra.mxu0 %v511
        %884 = vmatprep.subr.bf16.mxu0 %v514
        %885 = vmatpush1.bf16.msra.mxu0 %v513
        %886 = vmatprep.subr.bf16.mxu0 %v516
        %887 = vmatpush1.bf16.msra.mxu0 %v515
        %888 = vmatprep.subr.bf16.mxu0 %v518
        %889 = vmatpush1.bf16.msra.mxu0 %v517
        %890 = vmatprep.mubr.bf16.mxu0 %v768
        %891 = vmatmul.mubr.bf16.gmra.mrb[0].mxu0 %v767
        %v892 = vpop.f32.mrb[0].mxu0
        %v893 = vadd.f32 0.0, %v892
        %v894 = vpop.f32.mrb[0].mxu0
        %v895 = vadd.f32 0.0, %v894
        %v896 = vpop.f32.mrb[0].mxu0
        %v897 = vadd.f32 0.0, %v896
        %v898 = vpop.f32.mrb[0].mxu0
        %v899 = vadd.f32 0.0, %v898
        %900 = vmatprep.mubr.bf16.mxu0 %v776
        %901 = vmatmul.mubr.bf16.gmra.mrb[0].mxu0 %v775
        %v902 = vpop.f32.mrb[0].mxu0
        %v903 = vadd.f32 0.0, %v902
        %v904 = vpop.f32.mrb[0].mxu0
        %v905 = vadd.f32 0.0, %v904
        %v906 = vpop.f32.mrb[0].mxu0
        %v907 = vadd.f32 0.0, %v906
        %v908 = vpop.f32.mrb[0].mxu0
        %v909 = vadd.f32 0.0, %v908
        %910 = vmatprep.mubr.bf16.mxu0 %v784
        %911 = vmatmul.mubr.bf16.gmra.mrb[0].mxu0 %v783
        %v912 = vpop.f32.mrb[0].mxu0
        %v913 = vadd.f32 0.0, %v912
        %v914 = vpop.f32.mrb[0].mxu0
        %v915 = vadd.f32 0.0, %v914
        %v916 = vpop.f32.mrb[0].mxu0
        %v917 = vadd.f32 0.0, %v916
        %v918 = vpop.f32.mrb[0].mxu0
        %v919 = vadd.f32 0.0, %v918
        %920 = vmatprep.mubr.bf16.mxu0 %v792
        %921 = vmatmul.mubr.bf16.gmra.mrb[0].mxu0 %v791
        %v922 = vpop.f32.mrb[0].mxu0
        %v923 = vadd.f32 0.0, %v922
        %v924 = vpop.f32.mrb[0].mxu0
        %v925 = vadd.f32 0.0, %v924
        %v926 = vpop.f32.mrb[0].mxu0
        %v927 = vadd.f32 0.0, %v926
        %v928 = vpop.f32.mrb[0].mxu0
        %v929 = vadd.f32 0.0, %v928
        %930 = vmatprep.mubr.bf16.mxu0 %v800
        %931 = vmatmul.mubr.bf16.gmra.mrb[0].mxu0 %v799
        %v932 = vpop.f32.mrb[0].mxu0
        %v933 = vadd.f32 0.0, %v932
        %v934 = vpop.f32.mrb[0].mxu0
        %v935 = vadd.f32 0.0, %v934
        %v936 = vpop.f32.mrb[0].mxu0
        %v937 = vadd.f32 0.0, %v936
        %v938 = vpop.f32.mrb[0].mxu0
        %v939 = vadd.f32 0.0, %v938
        %940 = vdwg.mxu0
        %941 = vmatprep.subr.bf16.mxu0 %v520
        %942 = vmatpush1.bf16.msra.mxu0 %v519
        %943 = vmatprep.subr.bf16.mxu0 %v522
        %944 = vmatpush1.bf16.msra.mxu0 %v521
        %945 = vmatprep.subr.bf16.mxu0 %v524
        %946 = vmatpush1.bf16.msra.mxu0 %v523
        %947 = vmatprep.subr.bf16.mxu0 %v526
        %948 = vmatpush1.bf16.msra.mxu0 %v525
        %949 = vmatprep.subr.bf16.mxu0 %v528
        %950 = vmatpush1.bf16.msra.mxu0 %v527
        %951 = vmatprep.subr.bf16.mxu0 %v530
        %952 = vmatpush1.bf16.msra.mxu0 %v529
        %953 = vmatprep.subr.bf16.mxu0 %v532
        %954 = vmatpush1.bf16.msra.mxu0 %v531
        %955 = vmatprep.subr.bf16.mxu0 %v534
        %956 = vmatpush1.bf16.msra.mxu0 %v533
        %957 = vmatprep.subr.bf16.mxu0 %v536
        %958 = vmatpush1.bf16.msra.mxu0 %v535
        %959 = vmatprep.subr.bf16.mxu0 %v538
        %960 = vmatpush1.bf16.msra.mxu0 %v537
        %961 = vmatprep.subr.bf16.mxu0 %v540
        %962 = vmatpush1.bf16.msra.mxu0 %v539
        %963 = vmatprep.subr.bf16.mxu0 %v542
        %964 = vmatpush1.bf16.msra.mxu0 %v541
        %965 = vmatprep.subr.bf16.mxu0 %v544
        %966 = vmatpush1.bf16.msra.mxu0 %v543
        %967 = vmatprep.subr.bf16.mxu0 %v546
        %968 = vmatpush1.bf16.msra.mxu0 %v545
        %969 = vmatprep.subr.bf16.mxu0 %v548
        %970 = vmatpush1.bf16.msra.mxu0 %v547
        %971 = vmatprep.subr.bf16.mxu0 %v550
        %972 = vmatpush1.bf16.msra.mxu0 %v549
        %973 = vmatprep.mubr.bf16.mxu0 %v770
        %974 = vmatmul.mubr.bf16.gmra.mrb[0].mxu0 %v769
        %v975 = vpop.f32.mrb[0].mxu0
        %v976 = vadd.f32 %v893, %v975
        %v977 = vpop.f32.mrb[0].mxu0
        %v978 = vadd.f32 %v895, %v977
        %v979 = vpop.f32.mrb[0].mxu0
        %v980 = vadd.f32 %v897, %v979
        %v981 = vpop.f32.mrb[0].mxu0
        %v982 = vadd.f32 %v899, %v981
        %983 = vmatprep.mubr.bf16.mxu0 %v778
        %984 = vmatmul.mubr.bf16.gmra.mrb[0].mxu0 %v777
        %v985 = vpop.f32.mrb[0].mxu0
        %v986 = vadd.f32 %v903, %v985
        %v987 = vpop.f32.mrb[0].mxu0
        %v988 = vadd.f32 %v905, %v987
        %v989 = vpop.f32.mrb[0].mxu0
        %v990 = vadd.f32 %v907, %v989
        %v991 = vpop.f32.mrb[0].mxu0
        %v992 = vadd.f32 %v909, %v991
        %993 = vmatprep.mubr.bf16.mxu0 %v786
        %994 = vmatmul.mubr.bf16.gmra.mrb[0].mxu0 %v785
        %v995 = vpop.f32.mrb[0].mxu0
        %v996 = vadd.f32 %v913, %v995
        %v997 = vpop.f32.mrb[0].mxu0
        %v998 = vadd.f32 %v915, %v997
        %v999 = vpop.f32.mrb[0].mxu0
        %v1000 = vadd.f32 %v917, %v999
        %v1001 = vpop.f32.mrb[0].mxu0
        %v1002 = vadd.f32 %v919, %v1001
        %1003 = vmatprep.mubr.bf16.mxu0 %v794
        %1004 = vmatmul.mubr.bf16.gmra.mrb[0].mxu0 %v793
        %v1005 = vpop.f32.mrb[0].mxu0
        %v1006 = vadd.f32 %v923, %v1005
        %v1007 = vpop.f32.mrb[0].mxu0
        %v1008 = vadd.f32 %v925, %v1007
        %v1009 = vpop.f32.mrb[0].mxu0
        %v1010 = vadd.f32 %v927, %v1009
        %v1011 = vpop.f32.mrb[0].mxu0
        %v1012 = vadd.f32 %v929, %v1011
        %1013 = vmatprep.mubr.bf16.mxu0 %v802
        %1014 = vmatmul.mubr.bf16.gmra.mrb[0].mxu0 %v801
        %v1015 = vpop.f32.mrb[0].mxu0
        %v1016 = vadd.f32 %v933, %v1015
        %v1017 = vpop.f32.mrb[0].mxu0
        %v1018 = vadd.f32 %v935, %v1017
        %v1019 = vpop.f32.mrb[0].mxu0
        %v1020 = vadd.f32 %v937, %v1019
        %v1021 = vpop.f32.mrb[0].mxu0
        %v1022 = vadd.f32 %v939, %v1021
        %1023 = vdwg.mxu0
        %1024 = vmatprep.subr.bf16.mxu0 %v552
        %1025 = vmatpush1.bf16.msra.mxu0 %v551
        %1026 = vmatprep.subr.bf16.mxu0 %v554
        %1027 = vmatpush1.bf16.msra.mxu0 %v553
        %1028 = vmatprep.subr.bf16.mxu0 %v556
        %1029 = vmatpush1.bf16.msra.mxu0 %v555
        %1030 = vmatprep.subr.bf16.mxu0 %v558
        %1031 = vmatpush1.bf16.msra.mxu0 %v557
        %1032 = vmatprep.subr.bf16.mxu0 %v560
        %1033 = vmatpush1.bf16.msra.mxu0 %v559
        %1034 = vmatprep.subr.bf16.mxu0 %v562
        %1035 = vmatpush1.bf16.msra.mxu0 %v561
        %1036 = vmatprep.subr.bf16.mxu0 %v564
        %1037 = vmatpush1.bf16.msra.mxu0 %v563
        %1038 = vmatprep.subr.bf16.mxu0 %v566
        %1039 = vmatpush1.bf16.msra.mxu0 %v565
        %1040 = vmatprep.subr.bf16.mxu0 %v568
        %1041 = vmatpush1.bf16.msra.mxu0 %v567
        %1042 = vmatprep.subr.bf16.mxu0 %v570
        %1043 = vmatpush1.bf16.msra.mxu0 %v569
        %1044 = vmatprep.subr.bf16.mxu0 %v572
        %1045 = vmatpush1.bf16.msra.mxu0 %v571
        %1046 = vmatprep.subr.bf16.mxu0 %v574
        %1047 = vmatpush1.bf16.msra.mxu0 %v573
        %1048 = vmatprep.subr.bf16.mxu0 %v576
        %1049 = vmatpush1.bf16.msra.mxu0 %v575
        %1050 = vmatprep.subr.bf16.mxu0 %v578
        %1051 = vmatpush1.bf16.msra.mxu0 %v577
        %1052 = vmatprep.subr.bf16.mxu0 %v580
        %1053 = vmatpush1.bf16.msra.mxu0 %v579
        %1054 = vmatprep.subr.bf16.mxu0 %v582
        %1055 = vmatpush1.bf16.msra.mxu0 %v581
        %1056 = vmatprep.mubr.bf16.mxu0 %v772
        %1057 = vmatmul.mubr.bf16.gmra.mrb[0].mxu0 %v771
        %v1058 = vpop.f32.mrb[0].mxu0
        %v1059 = vadd.f32 %v976, %v1058
        %v1060 = vpop.f32.mrb[0].mxu0
        %v1061 = vadd.f32 %v978, %v1060
        %v1062 = vpop.f32.mrb[0].mxu0
        %v1063 = vadd.f32 %v980, %v1062
        %v1064 = vpop.f32.mrb[0].mxu0
        %v1065 = vadd.f32 %v982, %v1064
        %1066 = vmatprep.mubr.bf16.mxu0 %v780
        %1067 = vmatmul.mubr.bf16.gmra.mrb[0].mxu0 %v779
        %v1068 = vpop.f32.mrb[0].mxu0
        %v1069 = vadd.f32 %v986, %v1068
        %v1070 = vpop.f32.mrb[0].mxu0
        %v1071 = vadd.f32 %v988, %v1070
        %v1072 = vpop.f32.mrb[0].mxu0
        %v1073 = vadd.f32 %v990, %v1072
        %v1074 = vpop.f32.mrb[0].mxu0
        %v1075 = vadd.f32 %v992, %v1074
        %1076 = vmatprep.mubr.bf16.mxu0 %v788
        %1077 = vmatmul.mubr.bf16.gmra.mrb[0].mxu0 %v787
        %v1078 = vpop.f32.mrb[0].mxu0
        %v1079 = vadd.f32 %v996, %v1078
        %v1080 = vpop.f32.mrb[0].mxu0
        %v1081 = vadd.f32 %v998, %v1080
        %v1082 = vpop.f32.mrb[0].mxu0
        %v1083 = vadd.f32 %v1000, %v1082
        %v1084 = vpop.f32.mrb[0].mxu0
        %v1085 = vadd.f32 %v1002, %v1084
        %1086 = vmatprep.mubr.bf16.mxu0 %v796
        %1087 = vmatmul.mubr.bf16.gmra.mrb[0].mxu0 %v795
        %v1088 = vpop.f32.mrb[0].mxu0
        %v1089 = vadd.f32 %v1006, %v1088
        %v1090 = vpop.f32.mrb[0].mxu0
        %v1091 = vadd.f32 %v1008, %v1090
        %v1092 = vpop.f32.mrb[0].mxu0
        %v1093 = vadd.f32 %v1010, %v1092
        %v1094 = vpop.f32.mrb[0].mxu0
        %v1095 = vadd.f32 %v1012, %v1094
        %1096 = vmatprep.mubr.bf16.mxu0 %v804
        %1097 = vmatmul.mubr.bf16.gmra.mrb[0].mxu0 %v803
        %v1098 = vpop.f32.mrb[0].mxu0
        %v1099 = vadd.f32 %v1016, %v1098
        %v1100 = vpop.f32.mrb[0].mxu0
        %v1101 = vadd.f32 %v1018, %v1100
        %v1102 = vpop.f32.mrb[0].mxu0
        %v1103 = vadd.f32 %v1020, %v1102
        %v1104 = vpop.f32.mrb[0].mxu0
        %v1105 = vadd.f32 %v1022, %v1104
        %1106 = vdwg.mxu0
        %1107 = vmatprep.subr.bf16.mxu0 %v584
        %1108 = vmatpush1.bf16.msra.mxu0 %v583
        %1109 = vmatprep.subr.bf16.mxu0 %v586
        %1110 = vmatpush1.bf16.msra.mxu0 %v585
        %1111 = vmatprep.subr.bf16.mxu0 %v588
        %1112 = vmatpush1.bf16.msra.mxu0 %v587
        %1113 = vmatprep.subr.bf16.mxu0 %v590
        %1114 = vmatpush1.bf16.msra.mxu0 %v589
        %1115 = vmatprep.subr.bf16.mxu0 %v592
        %1116 = vmatpush1.bf16.msra.mxu0 %v591
        %1117 = vmatprep.subr.bf16.mxu0 %v594
        %1118 = vmatpush1.bf16.msra.mxu0 %v593
        %1119 = vmatprep.subr.bf16.mxu0 %v596
        %1120 = vmatpush1.bf16.msra.mxu0 %v595
        %1121 = vmatprep.subr.bf16.mxu0 %v598
        %1122 = vmatpush1.bf16.msra.mxu0 %v597
        %1123 = vmatprep.subr.bf16.mxu0 %v600
        %1124 = vmatpush1.bf16.msra.mxu0 %v599
        %1125 = vmatprep.subr.bf16.mxu0 %v602
        %1126 = vmatpush1.bf16.msra.mxu0 %v601
        %1127 = vmatprep.subr.bf16.mxu0 %v604
        %1128 = vmatpush1.bf16.msra.mxu0 %v603
        %1129 = vmatprep.subr.bf16.mxu0 %v606
        %1130 = vmatpush1.bf16.msra.mxu0 %v605
        %1131 = vmatprep.subr.bf16.mxu0 0
        %1132 = vmatpush1.bf16.msra.mxu0 0
        %1133 = vmatprep.subr.bf16.mxu0 0
        %1134 = vmatpush1.bf16.msra.mxu0 0
        %1135 = vmatprep.subr.bf16.mxu0 0
        %1136 = vmatpush1.bf16.msra.mxu0 0
        %1137 = vmatprep.subr.bf16.mxu0 0
        %1138 = vmatpush1.bf16.msra.mxu0 0
        %1139 = vmatprep.mubr.bf16.mxu0 %v844
        %1140 = vmatmul.mubr.bf16.gmra.mrb[0].mxu0 %v773
        %v1141 = vpop.f32.mrb[0].mxu0
        %v1142 = vadd.f32 %v1059, %v1141
        %v1143 = vpop.f32.mrb[0].mxu0
        %v1144 = vadd.f32 %v1061, %v1143
        %v1145 = vpop.f32.mrb[0].mxu0
        %v1146 = vadd.f32 %v1063, %v1145
        %v1147 = vpop.f32.mrb[0].mxu0
        %v1148 = vadd.f32 %v1065, %v1147
        %1149 = vmatprep.mubr.bf16.mxu0 %v847
        %1150 = vmatmul.mubr.bf16.gmra.mrb[0].mxu0 %v781
        %v1151 = vpop.f32.mrb[0].mxu0
        %v1152 = vadd.f32 %v1069, %v1151
        %v1153 = vpop.f32.mrb[0].mxu0
        %v1154 = vadd.f32 %v1071, %v1153
        %v1155 = vpop.f32.mrb[0].mxu0
        %v1156 = vadd.f32 %v1073, %v1155
        %v1157 = vpop.f32.mrb[0].mxu0
        %v1158 = vadd.f32 %v1075, %v1157
        %1159 = vmatprep.mubr.bf16.mxu0 %v850
        %1160 = vmatmul.mubr.bf16.gmra.mrb[0].mxu0 %v789
        %v1161 = vpop.f32.mrb[0].mxu0
        %v1162 = vadd.f32 %v1079, %v1161
        %v1163 = vpop.f32.mrb[0].mxu0
        %v1164 = vadd.f32 %v1081, %v1163
        %v1165 = vpop.f32.mrb[0].mxu0
        %v1166 = vadd.f32 %v1083, %v1165
        %v1167 = vpop.f32.mrb[0].mxu0
        %v1168 = vadd.f32 %v1085, %v1167
        %1169 = vmatprep.mubr.bf16.mxu0 %v853
        %1170 = vmatmul.mubr.bf16.gmra.mrb[0].mxu0 %v797
        %v1171 = vpop.f32.mrb[0].mxu0
        %v1172 = vadd.f32 %v1089, %v1171
        %v1173 = vpop.f32.mrb[0].mxu0
        %v1174 = vadd.f32 %v1091, %v1173
        %v1175 = vpop.f32.mrb[0].mxu0
        %v1176 = vadd.f32 %v1093, %v1175
        %v1177 = vpop.f32.mrb[0].mxu0
        %v1178 = vadd.f32 %v1095, %v1177
        %1179 = vmatprep.mubr.bf16.mxu0 %v856
        %1180 = vmatmul.mubr.bf16.gmra.mrb[0].mxu0 %v805
        %v1181 = vpop.f32.mrb[0].mxu0
        %v1182 = vadd.f32 %v1099, %v1181
        %v1183 = vpop.f32.mrb[0].mxu0
        %v1184 = vadd.f32 %v1101, %v1183
        %v1185 = vpop.f32.mrb[0].mxu0
        %v1186 = vadd.f32 %v1103, %v1185
        %v1187 = vpop.f32.mrb[0].mxu0
        %v1188 = vadd.f32 %v1105, %v1187
        %1189 = vdwg.mxu0
        %vm1190 = vcmask 556032
        %v1191 = vsel %vm1190, %v1144, 0.0
        %v1192 = vadd.f32 %v1142, %v1191
        %1193 = vadd.xlane.f32.xlu0 %v1192
        %v1194 = vpop.xlane.xlu0 %1193
        %v1195 = vsel %vm1190, %v1148, 0.0
        %v1196 = vadd.f32 %v1146, %v1195
        %1197 = vadd.xlane.f32.xlu0 %v1196
        %v1198 = vpop.xlane.xlu0 %1197
        %v1199 = vsel %vm1190, %v1154, 0.0
        %v1200 = vadd.f32 %v1152, %v1199
        %1201 = vadd.xlane.f32.xlu0 %v1200
        %v1202 = vpop.xlane.xlu0 %1201
        %v1203 = vsel %vm1190, %v1158, 0.0
        %v1204 = vadd.f32 %v1156, %v1203
        %1205 = vadd.xlane.f32.xlu0 %v1204
        %v1206 = vpop.xlane.xlu0 %1205
        %v1207 = vsel %vm1190, %v1164, 0.0
        %v1208 = vadd.f32 %v1162, %v1207
        %1209 = vadd.xlane.f32.xlu0 %v1208
        %v1210 = vpop.xlane.xlu0 %1209
        %v1211 = vsel %vm1190, %v1168, 0.0
        %v1212 = vadd.f32 %v1166, %v1211
        %1213 = vadd.xlane.f32.xlu0 %v1212
        %v1214 = vpop.xlane.xlu0 %1213
        %v1215 = vsel %vm1190, %v1174, 0.0
        %v1216 = vadd.f32 %v1172, %v1215
        %1217 = vadd.xlane.f32.xlu0 %v1216
        %v1218 = vpop.xlane.xlu0 %1217
        %v1219 = vsel %vm1190, %v1178, 0.0
        %v1220 = vadd.f32 %v1176, %v1219
        %1221 = vadd.xlane.f32.xlu0 %v1220
        %v1222 = vpop.xlane.xlu0 %1221
        %v1223 = vsel %vm1190, %v1184, 0.0
        %v1224 = vadd.f32 %v1182, %v1223
        %1225 = vadd.xlane.f32.xlu0 %v1224
        %v1226 = vpop.xlane.xlu0 %1225
        %v1227 = vsel %vm1190, %v1188, 0.0
        %v1228 = vadd.f32 %v1186, %v1227
        %1229 = vadd.xlane.f32.xlu0 %v1228
        %v1230 = vpop.xlane.xlu0 %1229
        %v1231 = vmul.f32 %v1142, %v1142
        %v1232 = vmul.f32 %v1144, %v1144
        %v1233 = vmul.f32 %v1146, %v1146
        %v1234 = vmul.f32 %v1148, %v1148
        %v1235 = vmul.f32 %v1152, %v1152
        %v1236 = vmul.f32 %v1154, %v1154
        %v1237 = vmul.f32 %v1156, %v1156
        %v1238 = vmul.f32 %v1158, %v1158
        %v1239 = vmul.f32 %v1162, %v1162
        %v1240 = vmul.f32 %v1164, %v1164
        %v1241 = vmul.f32 %v1166, %v1166
        %v1242 = vmul.f32 %v1168, %v1168
        %v1243 = vmul.f32 %v1172, %v1172
        %v1244 = vmul.f32 %v1174, %v1174
        %v1245 = vmul.f32 %v1176, %v1176
        %v1246 = vmul.f32 %v1178, %v1178
        %v1247 = vmul.f32 %v1182, %v1182
        %v1248 = vmul.f32 %v1184, %v1184
        %v1249 = vmul.f32 %v1186, %v1186
        %v1250 = vmul.f32 %v1188, %v1188
        %v1251 = vsel %vm1190, %v1232, 0.0
        %v1252 = vadd.f32 %v1231, %v1251
        %1253 = vadd.xlane.f32.xlu0 %v1252
        %v1254 = vpop.xlane.xlu0 %1253
        %v1255 = vsel %vm1190, %v1234, 0.0
        %v1256 = vadd.f32 %v1233, %v1255
        %1257 = vadd.xlane.f32.xlu0 %v1256
        %v1258 = vpop.xlane.xlu0 %1257
        %v1259 = vsel %vm1190, %v1236, 0.0
        %v1260 = vadd.f32 %v1235, %v1259
        %1261 = vadd.xlane.f32.xlu0 %v1260
        %v1262 = vpop.xlane.xlu0 %1261
        %v1263 = vsel %vm1190, %v1238, 0.0
        %v1264 = vadd.f32 %v1237, %v1263
        %1265 = vadd.xlane.f32.xlu0 %v1264
        %v1266 = vpop.xlane.xlu0 %1265
        %v1267 = vsel %vm1190, %v1240, 0.0
        %v1268 = vadd.f32 %v1239, %v1267
        %1269 = vadd.xlane.f32.xlu0 %v1268
        %v1270 = vpop.xlane.xlu0 %1269
        %v1271 = vsel %vm1190, %v1242, 0.0
        %v1272 = vadd.f32 %v1241, %v1271
        %1273 = vadd.xlane.f32.xlu0 %v1272
        %v1274 = vpop.xlane.xlu0 %1273
        %v1275 = vsel %vm1190, %v1244, 0.0
        %v1276 = vadd.f32 %v1243, %v1275
        %1277 = vadd.xlane.f32.xlu0 %v1276
        %v1278 = vpop.xlane.xlu0 %1277
        %v1279 = vsel %vm1190, %v1246, 0.0
        %v1280 = vadd.f32 %v1245, %v1279
        %1281 = vadd.xlane.f32.xlu0 %v1280
        %v1282 = vpop.xlane.xlu0 %1281
        %v1283 = vsel %vm1190, %v1248, 0.0
        %v1284 = vadd.f32 %v1247, %v1283
        %1285 = vadd.xlane.f32.xlu0 %v1284
        %v1286 = vpop.xlane.xlu0 %1285
        %v1287 = vsel %vm1190, %v1250, 0.0
        %v1288 = vadd.f32 %v1249, %v1287
        %1289 = vadd.xlane.f32.xlu0 %v1288
        %v1290 = vpop.xlane.xlu0 %1289
        %v1291 = vmul.f32 %v1194, 0.0051020407
        %v1292 = vmul.f32 %v1198, 0.0051020407
        %v1293 = vmul.f32 %v1202, 0.0051020407
        %v1294 = vmul.f32 %v1206, 0.0051020407
        %v1295 = vmul.f32 %v1210, 0.0051020407
        %v1296 = vmul.f32 %v1214, 0.0051020407
        %v1297 = vmul.f32 %v1218, 0.0051020407
        %v1298 = vmul.f32 %v1222, 0.0051020407
        %v1299 = vmul.f32 %v1226, 0.0051020407
        %v1300 = vmul.f32 %v1230, 0.0051020407
        %v1301 = vmul.f32 %v1254, 0.0051020407
        %v1302 = vmul.f32 %v1258, 0.0051020407
        %v1303 = vmul.f32 %v1262, 0.0051020407
        %v1304 = vmul.f32 %v1266, 0.0051020407
        %v1305 = vmul.f32 %v1270, 0.0051020407
        %v1306 = vmul.f32 %v1274, 0.0051020407
        %v1307 = vmul.f32 %v1278, 0.0051020407
        %v1308 = vmul.f32 %v1282, 0.0051020407
        %v1309 = vmul.f32 %v1286, 0.0051020407
        %v1310 = vmul.f32 %v1290, 0.0051020407
        %v1311 = vmul.f32 %v1291, %v1291
        %v1312 = vmul.f32 %v1292, %v1292
        %v1313 = vmul.f32 %v1293, %v1293
        %v1314 = vmul.f32 %v1294, %v1294
        %v1315 = vmul.f32 %v1295, %v1295
        %v1316 = vmul.f32 %v1296, %v1296
        %v1317 = vmul.f32 %v1297, %v1297
        %v1318 = vmul.f32 %v1298, %v1298
        %v1319 = vmul.f32 %v1299, %v1299
        %v1320 = vmul.f32 %v1300, %v1300
        %v1321 = vsub.f32 %v1301, %v1311
        %v1322 = vsub.f32 %v1302, %v1312
        %v1323 = vsub.f32 %v1303, %v1313
        %v1324 = vsub.f32 %v1304, %v1314
        %v1325 = vsub.f32 %v1305, %v1315
        %v1326 = vsub.f32 %v1306, %v1316
        %v1327 = vsub.f32 %v1307, %v1317
        %v1328 = vsub.f32 %v1308, %v1318
        %v1329 = vsub.f32 %v1309, %v1319
        %v1330 = vsub.f32 %v1310, %v1320
        %v1331 = vmax.f32 %v1321, 0.0
        %v1332 = vmax.f32 %v1322, 0.0
        %v1333 = vmax.f32 %v1323, 0.0
        %v1334 = vmax.f32 %v1324, 0.0
        %v1335 = vmax.f32 %v1325, 0.0
        %v1336 = vmax.f32 %v1326, 0.0
        %v1337 = vmax.f32 %v1327, 0.0
        %v1338 = vmax.f32 %v1328, 0.0
        %v1339 = vmax.f32 %v1329, 0.0
        %v1340 = vmax.f32 %v1330, 0.0
        %v1341 = vadd.f32 %v1331, 0.001
        %v1342 = vadd.f32 %v1332, 0.001
        %v1343 = vadd.f32 %v1333, 0.001
        %v1344 = vadd.f32 %v1334, 0.001
        %v1345 = vadd.f32 %v1335, 0.001
        %v1346 = vadd.f32 %v1336, 0.001
        %v1347 = vadd.f32 %v1337, 0.001
        %v1348 = vadd.f32 %v1338, 0.001
        %v1349 = vadd.f32 %v1339, 0.001
        %v1350 = vadd.f32 %v1340, 0.001
        %v1351 = vrsqrt.pop %v1341
        %v1352 = vrsqrt.pop %v1342
        %v1353 = vrsqrt.pop %v1343
        %v1354 = vrsqrt.pop %v1344
        %v1355 = vrsqrt.pop %v1345
        %v1356 = vrsqrt.pop %v1346
        %v1357 = vrsqrt.pop %v1347
        %v1358 = vrsqrt.pop %v1348
        %v1359 = vrsqrt.pop %v1349
        %v1360 = vrsqrt.pop %v1350
        %v1361 = vld [vmem:[%s237] sm:$0xff]
        %v1362 = vld [vmem:[%s237 + $0x8] sm:$0xff]
        %v1363 = vld [vmem:[%s237 + $0x10] sm:$0xff]
        %v1364 = vld [vmem:[%s237 + $0x18] sm:$0xff]
        %v1365 = vld [vmem:[%s237 + $0x20] sm:$0xff]
        %v1366 = vld [vmem:[%s237 + $0x28] sm:$0xff]
        %v1367 = vld [vmem:[%s237 + $0x30] sm:$0xff]
        %v1368 = vld [vmem:[%s237 + $0x38] sm:$0xff]
        %v1369 = vld [vmem:[%s237 + $0x40] sm:$0xff]
        %v1370 = vld [vmem:[%s237 + $0x48] sm:$0xff]
        %v1371 = vmul.f32 %v1361, %v1351
        %v1372 = vmul.f32 %v1362, %v1352
        %v1373 = vmul.f32 %v1363, %v1353
        %v1374 = vmul.f32 %v1364, %v1354
        %v1375 = vmul.f32 %v1365, %v1355
        %v1376 = vmul.f32 %v1366, %v1356
        %v1377 = vmul.f32 %v1367, %v1357
        %v1378 = vmul.f32 %v1368, %v1358
        %v1379 = vmul.f32 %v1369, %v1359
        %v1380 = vmul.f32 %v1370, %v1360
        %v1381 = vld [vmem:[%s243] sm:$0xff]
        %v1382 = vld [vmem:[%s243 + $0x8] sm:$0xff]
        %v1383 = vld [vmem:[%s243 + $0x10] sm:$0xff]
        %v1384 = vld [vmem:[%s243 + $0x18] sm:$0xff]
        %v1385 = vld [vmem:[%s243 + $0x20] sm:$0xff]
        %v1386 = vld [vmem:[%s243 + $0x28] sm:$0xff]
        %v1387 = vld [vmem:[%s243 + $0x30] sm:$0xff]
        %v1388 = vld [vmem:[%s243 + $0x38] sm:$0xff]
        %v1389 = vld [vmem:[%s243 + $0x40] sm:$0xff]
        %v1390 = vld [vmem:[%s243 + $0x48] sm:$0xff]
        %v1391 = vmul.f32 %v1291, %v1371
        %v1392 = vmul.f32 %v1292, %v1372
        %v1393 = vmul.f32 %v1293, %v1373
        %v1394 = vmul.f32 %v1294, %v1374
        %v1395 = vmul.f32 %v1295, %v1375
        %v1396 = vmul.f32 %v1296, %v1376
        %v1397 = vmul.f32 %v1297, %v1377
        %v1398 = vmul.f32 %v1298, %v1378
        %v1399 = vmul.f32 %v1299, %v1379
        %v1400 = vmul.f32 %v1300, %v1380
        %v1401 = vsub.f32 %v1381, %v1391
        %v1402 = vsub.f32 %v1382, %v1392
        %v1403 = vsub.f32 %v1383, %v1393
        %v1404 = vsub.f32 %v1384, %v1394
        %v1405 = vsub.f32 %v1385, %v1395
        %v1406 = vsub.f32 %v1386, %v1396
        %v1407 = vsub.f32 %v1387, %v1397
        %v1408 = vsub.f32 %v1388, %v1398
        %v1409 = vsub.f32 %v1389, %v1399
        %v1410 = vsub.f32 %v1390, %v1400
        %1412 = vset.pattern.permute.xlu0 0
        %1413 = vperm.xlu0 %1412, %v1371
        %v1414 = vpop.permute.xlu0 %1413
        %1417 = vset.pattern.permute.xlu0 0
        %1418 = vperm.xlu0 %1417, %v1372
        %v1419 = vpop.permute.xlu0 %1418
        %1422 = vset.pattern.permute.xlu0 0
        %1423 = vperm.xlu0 %1422, %v1373
        %v1424 = vpop.permute.xlu0 %1423
        %1427 = vset.pattern.permute.xlu0 0
        %1428 = vperm.xlu0 %1427, %v1374
        %v1429 = vpop.permute.xlu0 %1428
        %1432 = vset.pattern.permute.xlu0 0
        %1433 = vperm.xlu0 %1432, %v1375
        %v1434 = vpop.permute.xlu0 %1433
        %1437 = vset.pattern.permute.xlu0 0
        %1438 = vperm.xlu0 %1437, %v1376
        %v1439 = vpop.permute.xlu0 %1438
        %1442 = vset.pattern.permute.xlu0 0
        %1443 = vperm.xlu0 %1442, %v1377
        %v1444 = vpop.permute.xlu0 %1443
        %1447 = vset.pattern.permute.xlu0 0
        %1448 = vperm.xlu0 %1447, %v1378
        %v1449 = vpop.permute.xlu0 %1448
        %1452 = vset.pattern.permute.xlu0 0
        %1453 = vperm.xlu0 %1452, %v1379
        %v1454 = vpop.permute.xlu0 %1453
        %1457 = vset.pattern.permute.xlu0 0
        %1458 = vperm.xlu0 %1457, %v1380
        %v1459 = vpop.permute.xlu0 %1458
        %v1461 = vmul.f32 %v1142, %v1414
        %v1462 = vmul.f32 %v1144, %v1414
        %v1463 = vmul.f32 %v1146, %v1419
        %v1464 = vmul.f32 %v1148, %v1419
        %v1465 = vmul.f32 %v1152, %v1424
        %v1466 = vmul.f32 %v1154, %v1424
        %v1467 = vmul.f32 %v1156, %v1429
        %v1468 = vmul.f32 %v1158, %v1429
        %v1469 = vmul.f32 %v1162, %v1434
        %v1470 = vmul.f32 %v1164, %v1434
        %v1471 = vmul.f32 %v1166, %v1439
        %v1472 = vmul.f32 %v1168, %v1439
        %v1473 = vmul.f32 %v1172, %v1444
        %v1474 = vmul.f32 %v1174, %v1444
        %v1475 = vmul.f32 %v1176, %v1449
        %v1476 = vmul.f32 %v1178, %v1449
        %v1477 = vmul.f32 %v1182, %v1454
        %v1478 = vmul.f32 %v1184, %v1454
        %v1479 = vmul.f32 %v1186, %v1459
        %v1480 = vmul.f32 %v1188, %v1459
        %1482 = vset.pattern.permute.xlu0 0
        %1483 = vperm.xlu0 %1482, %v1401
        %v1484 = vpop.permute.xlu0 %1483
        %1487 = vset.pattern.permute.xlu0 0
        %1488 = vperm.xlu0 %1487, %v1402
        %v1489 = vpop.permute.xlu0 %1488
        %1492 = vset.pattern.permute.xlu0 0
        %1493 = vperm.xlu0 %1492, %v1403
        %v1494 = vpop.permute.xlu0 %1493
        %1497 = vset.pattern.permute.xlu0 0
        %1498 = vperm.xlu0 %1497, %v1404
        %v1499 = vpop.permute.xlu0 %1498
        %1502 = vset.pattern.permute.xlu0 0
        %1503 = vperm.xlu0 %1502, %v1405
        %v1504 = vpop.permute.xlu0 %1503
        %1507 = vset.pattern.permute.xlu0 0
        %1508 = vperm.xlu0 %1507, %v1406
        %v1509 = vpop.permute.xlu0 %1508
        %1512 = vset.pattern.permute.xlu0 0
        %1513 = vperm.xlu0 %1512, %v1407
        %v1514 = vpop.permute.xlu0 %1513
        %1517 = vset.pattern.permute.xlu0 0
        %1518 = vperm.xlu0 %1517, %v1408
        %v1519 = vpop.permute.xlu0 %1518
        %1522 = vset.pattern.permute.xlu0 0
        %1523 = vperm.xlu0 %1522, %v1409
        %v1524 = vpop.permute.xlu0 %1523
        %1527 = vset.pattern.permute.xlu0 0
        %1528 = vperm.xlu0 %1527, %v1410
        %v1529 = vpop.permute.xlu0 %1528
        %v1531 = vadd.f32 %v1461, %v1484
        %v1532 = vadd.f32 %v1462, %v1484
        %v1533 = vadd.f32 %v1463, %v1489
        %v1534 = vadd.f32 %v1464, %v1489
        %v1535 = vadd.f32 %v1465, %v1494
        %v1536 = vadd.f32 %v1466, %v1494
        %v1537 = vadd.f32 %v1467, %v1499
        %v1538 = vadd.f32 %v1468, %v1499
        %v1539 = vadd.f32 %v1469, %v1504
        %v1540 = vadd.f32 %v1470, %v1504
        %v1541 = vadd.f32 %v1471, %v1509
        %v1542 = vadd.f32 %v1472, %v1509
        %v1543 = vadd.f32 %v1473, %v1514
        %v1544 = vadd.f32 %v1474, %v1514
        %v1545 = vadd.f32 %v1475, %v1519
        %v1546 = vadd.f32 %v1476, %v1519
        %v1547 = vadd.f32 %v1477, %v1524
        %v1548 = vadd.f32 %v1478, %v1524
        %v1549 = vadd.f32 %v1479, %v1529
        %v1550 = vadd.f32 %v1480, %v1529
        %1551 = vst [vmem:[%s225] sm:$0xff] %v1531
        %1552 = vst.msk [vmem:[%s225 + $0x8] sm:$0xff] %vm1190, %v1532
        %1553 = vst [vmem:[%s225 + $0x10] sm:$0xff] %v1533
        %1554 = vst.msk [vmem:[%s225 + $0x18] sm:$0xff] %vm1190, %v1534
        %1555 = vst [vmem:[%s225 + $0x20] sm:$0xff] %v1535
        %1556 = vst.msk [vmem:[%s225 + $0x28] sm:$0xff] %vm1190, %v1536
        %1557 = vst [vmem:[%s225 + $0x30] sm:$0xff] %v1537
        %1558 = vst.msk [vmem:[%s225 + $0x38] sm:$0xff] %vm1190, %v1538
        %1559 = vst [vmem:[%s225 + $0x40] sm:$0xff] %v1539
        %1560 = vst.msk [vmem:[%s225 + $0x48] sm:$0xff] %vm1190, %v1540
        %1561 = vst [vmem:[%s225 + $0x50] sm:$0xff] %v1541
        %1562 = vst.msk [vmem:[%s225 + $0x58] sm:$0xff] %vm1190, %v1542
        %1563 = vst [vmem:[%s225 + $0x60] sm:$0xff] %v1543
        %1564 = vst.msk [vmem:[%s225 + $0x68] sm:$0xff] %vm1190, %v1544
        %1565 = vst [vmem:[%s225 + $0x70] sm:$0xff] %v1545
        %1566 = vst.msk [vmem:[%s225 + $0x78] sm:$0xff] %vm1190, %v1546
        %1567 = vst [vmem:[%s225 + $0x80] sm:$0xff] %v1547
        %1568 = vst.msk [vmem:[%s225 + $0x88] sm:$0xff] %vm1190, %v1548
        %1569 = vst [vmem:[%s225 + $0x90] sm:$0xff] %v1549
        %1570 = vst.msk [vmem:[%s225 + $0x98] sm:$0xff] %vm1190, %v1550
        %s1571 = sand.u32 %s125, 1
        %s1572 = scalar_lea.sflag [#allocation3], %s1571
        %s1573 = sand.u32 %s125, 1
        %s1574 = smul.addr %s1573, 160
        %s1575 = scalar_lea.vmem [#allocation2], %s1574
        // Predicated region
        $region37: #{tpu_custom_call.1} parent=35 // pred_check
          %p1576 = pneg %p135
        $region38: #{tpu_custom_call.1} parent=35 // pred_check_branch
          %1578 = sbr.rel (%p1576) target = $region40
        $region39: #{tpu_custom_call.1} parent=35 // pred_region
          %s1579 = smul.u32 10, %s18
          %s1581 = ssub.s32 2560, 2560
          %1582 = vsyncadd %s1572, %s1581
          %s1583 = smul.addr %s1579, 2
          %s1584 = smul.addr %s1583, 128
          %s1585 = scalar_lea.hbm %s4, %s1584
          %s1586 = sshll.u32 %s1575, 4
          %s1587 = int_to_ptr.vmem [resolvable:$true] %s1586
          %1592 = dma.vmem_to_hbm [thread:$0]  %s1587, 2560, %s1585, %s1572, 256, 256, 16
        $region40: #{tpu_custom_call.1} parent=35 // pred_fallthru
          _
      $region36: #{tpu_custom_call.1} parent=5 // pred_fallthru
        _
      %p1593 = scmp.le.s32.totalorder 2, %s13
      // Predicated region
      $region41: #{tpu_custom_call.1} parent=5 // pred_check
        %p1594 = pneg %p1593
      $region42: #{tpu_custom_call.1} parent=5 // pred_check_branch
        %1596 = sbr.rel (%p1594) target = $region44
      $region43: #{tpu_custom_call.1} parent=5 // pred_region
        %s1597 = ssub.s32 %s13, 2
        // Predicated region
        $region45: #{tpu_custom_call.1} parent=43 // pred_check
          %p1598 = pneg %p141
        $region46: #{tpu_custom_call.1} parent=43 // pred_check_branch
          %1600 = sbr.rel (%p1598) target = $region48
        $region47: #{tpu_custom_call.1} parent=43 // pred_region
          %s1601 = sand.u32 %s126, 1
          %s1602 = scalar_lea.sflag [#allocation3], %s1601
          %s1603 = sand.u32 %s126, 1
          %s1604 = smul.addr %s1603, 160
          %s1605 = scalar_lea.vmem [#allocation2], %s1604
          %1606 = dma.done %s1602, 2560
        $region48: #{tpu_custom_call.1} parent=43 // pred_fallthru
          _
      $region44: #{tpu_custom_call.1} parent=5 // pred_fallthru
        _
    $region6: #{tpu_custom_call.1} parent=1 // loop_footer
      %s17 = sadd.s32 1, %s13
    $region7: #{tpu_custom_call.1} parent=1 // loop_footer_branch
      %12 = sbr.rel target = $region3
    $region8: #{tpu_custom_call.1} parent=1 // loop_exit
      _
    %1607 = vsyncpa [#allocation3], 1
    %s1608 = scalar_lea.sflag [#allocation3], 1
    %1609 = vsyncpa %s1608, 1

</llo_original>
